<compile_context>
chip_gen: v7x
topology: tpu7x:2x2x1
jax: 0.10.0
libtpu: 0.0.40
codegen_flags: <defaults>
</compile_context>

<pallas_src>
import functools

import jax
import jax.numpy as jnp
from jax import lax
from jax.experimental import pallas as pl
from jax.experimental.pallas import tpu as pltpu


def _attention_kernel(x_ref, wqkv_ref, bqkv_ref, wproj_ref, bproj_ref, o_ref,
                      *, scale, n_heads, head_dim):
    """One batch element per grid step.

    x_ref    : (N, dim)       activations (leading batch dim squeezed)
    wqkv_ref : (dim, 3*dim)   fused QKV weight, columns = [Q_all | K_all | V_all]
    bqkv_ref : (1, 3*dim)     fused QKV bias
    wproj_ref: (dim, dim)     output projection weight (pre-transposed)
    bproj_ref: (1, dim)       output projection bias
    o_ref    : (N, dim)       output block (x.dtype)
    """
    dim = n_heads * head_dim
    x = x_ref[...]                                                 # (N, dim)

    # --- fused QKV projection: one full-width MXU matmul (128-deep) ---------
    qkv = jnp.dot(x, wqkv_ref[...], preferred_element_type=jnp.float32)
    qkv = qkv + bqkv_ref[...]                                      # (N, 3*dim) f32

    # Lane-aligned views (each section starts on a 128-lane boundary).
    # Scale is folded into q (cheaper than scaling every (N, N) score tile).
    q = (qkv[:, :dim] * scale).astype(x.dtype)                     # (N, dim)
    k = qkv[:, dim:2 * dim].astype(x.dtype)
    v = qkv[:, 2 * dim:].astype(x.dtype)

    # --- per-head attention, unrolled over the (static) head count ----------
    # TODO(synk): attn_drop / proj_drop are identities here (p = 0.0); nonzero
    # dropout would use pltpu.prng_seed + pltpu.prng_random_bits.
    ctx_parts = []
    for h in range(n_heads):
        sl = slice(h * head_dim, (h + 1) * head_dim)
        # q_h @ k_h^T without an explicit transpose; accumulate in f32.
        s = lax.dot_general(q[:, sl], k[:, sl], (((1,), (1,)), ((), ())),
                            preferred_element_type=jnp.float32)    # (N, N)
        s = s - jnp.max(s, axis=-1, keepdims=True)
        p = jnp.exp(s)
        inv = pl.reciprocal(jnp.sum(p, axis=-1, keepdims=True), approx=True)
        p = (p * inv).astype(x.dtype)
        ctx_parts.append(jnp.dot(p, v[:, sl],
                                 preferred_element_type=jnp.float32))

    # Concatenated per-head context (head-major, matches flatten(2) in torch).
    ctx = jnp.concatenate(ctx_parts, axis=-1).astype(x.dtype)      # (N, dim)

    # --- output projection: one full-width matmul + bias --------------------
    out = jnp.dot(ctx, wproj_ref[...], preferred_element_type=jnp.float32)
    o_ref[...] = (out + bproj_ref[...]).astype(o_ref.dtype)


def pack_attention_params(w_qkv, b_qkv, w_proj, b_proj):
    """One-time layout glue. Call at parameter-load time, NOT per forward.

    nn.Linear computes x @ W^T, and the torch reshape (3, n_heads, head_dim)
    means W_qkv^T columns are already ordered [Q_allheads | K_allheads |
    V_allheads] with contiguous per-head blocks -> exactly the layout the
    kernel wants (each of Q/K/V starts on a 128-lane boundary).
    """
    wqkv_t = jnp.asarray(w_qkv).T                      # (dim, 3*dim)
    bqkv_2d = jnp.asarray(b_qkv).reshape(1, -1)        # (1, 3*dim)
    wproj_t = jnp.asarray(w_proj).T                    # (dim, dim)
    bproj_2d = jnp.asarray(b_proj).reshape(1, -1)      # (1, dim)
    return wqkv_t, bqkv_2d, wproj_t, bproj_2d


@functools.partial(jax.jit, static_argnames=("n_heads",))
def attention(x, wqkv_t, bqkv_2d, wproj_t, bproj_2d, *, n_heads):
    """x: (B, N, dim); packed params from pack_attention_params -> (B, N, dim)."""
    B, N, dim = x.shape
    head_dim = dim // n_heads
    scale = float(head_dim) ** -0.5

    flops = (2 * B * N * dim * 3 * dim                 # qkv projection
             + 4 * B * n_heads * N * N * head_dim      # q@k^T and attn@v
             + 2 * B * N * dim * dim)                  # output projection
    itemsize = jnp.dtype(x.dtype).itemsize
    bytes_accessed = itemsize * (2 * B * N * dim + 3 * dim * dim + 3 * dim
                                 + dim * dim + dim)

    return pl.pallas_call(
        functools.partial(_attention_kernel, scale=scale,
                          n_heads=n_heads, head_dim=head_dim),
        out_shape=jax.ShapeDtypeStruct((B, N, dim), x.dtype),
        grid_spec=pltpu.PrefetchScalarGridSpec(
            num_scalar_prefetch=0,
            grid=(B,),                                 # one step per batch element
            in_specs=[
                pl.BlockSpec((pl.Squeezed(), N, dim), lambda b: (b, 0, 0)),
                pl.BlockSpec((dim, 3 * dim), lambda b: (0, 0)),
                pl.BlockSpec((1, 3 * dim), lambda b: (0, 0)),
                pl.BlockSpec((dim, dim), lambda b: (0, 0)),
                pl.BlockSpec((1, dim), lambda b: (0, 0)),
            ],
            out_specs=pl.BlockSpec((pl.Squeezed(), N, dim), lambda b: (b, 0, 0)),
        ),
        compiler_params=pltpu.CompilerParams(
            dimension_semantics=("parallel",),
            vmem_limit_bytes=32 * 1024 * 1024),
        cost_estimate=pl.CostEstimate(flops=flops,
                                      transcendentals=B * n_heads * N * N,
                                      bytes_accessed=bytes_accessed),
    )(x, wqkv_t, bqkv_2d, wproj_t, bproj_2d)


if __name__ == "__main__":
    # Small shapes consistent with the module: B=2 samples, 64 tokens,
    # dim=128, n_heads=4 -> head_dim=32.
    B, N = 2, 64
    dim, n_heads = 128, 4
    head_dim = dim // n_heads

    key = jax.random.PRNGKey(0)
    kx, k1, k2, k3, k4 = jax.random.split(key, 5)

    x = jax.random.normal(kx, (B, N, dim), dtype=jnp.float32)
    w_qkv = jax.random.normal(k1, (3 * dim, dim), dtype=jnp.float32) * 0.02
    b_qkv = jax.random.normal(k2, (3 * dim,), dtype=jnp.float32) * 0.02
    w_proj = jax.random.normal(k3, (dim, dim), dtype=jnp.float32) * 0.02
    b_proj = jax.random.normal(k4, (dim,), dtype=jnp.float32) * 0.02

    # One-time weight packing (kept outside the jitted forward).
    packed = pack_attention_params(w_qkv, b_qkv, w_proj, b_proj)

    out = attention(x, *packed, n_heads=n_heads)
    out = jax.block_until_ready(out)

    # ----- pure-JAX reference replicating the PyTorch forward -----
    scale = head_dim ** -0.5
    qkv = x @ w_qkv.T + b_qkv                                     # (B, N, 3*dim)
    qkv = qkv.reshape(B, N, 3, n_heads, head_dim).transpose(2, 0, 3, 1, 4)
    q, k, v = qkv[0], qkv[1], qkv[2]                              # (B, H, N, hd)
    attn = jax.nn.softmax((q @ jnp.swapaxes(k, -2, -1)) * scale, axis=-1)
    ctx = (attn @ v).transpose(0, 2, 1, 3).reshape(B, N, dim)
    ref = ctx @ w_proj.T + b_proj

    assert out.shape == (B, N, dim), out.shape
    assert out.dtype == x.dtype, out.dtype
    # Tolerance accounts for TPU default reduced-precision f32 matmul passes
    # and the EUP approximate-reciprocal softmax normalization.
    assert jnp.allclose(out, ref, atol=2e-3, rtol=2e-3), \
        float(jnp.max(jnp.abs(out - ref)))
    print("KERNEL_OK")
</pallas_src>

<mosaic_0001>
module attributes {stable_mosaic.version = 11 : i64} {
  func.func @_attention_kernel(%arg0: i32, %arg1: memref<1x64x128xf32, #tpu.memory_space<vmem>>, %arg2: memref<128x384xf32, #tpu.memory_space<vmem>>, %arg3: memref<1x384xf32, #tpu.memory_space<vmem>>, %arg4: memref<128x128xf32, #tpu.memory_space<vmem>>, %arg5: memref<1x128xf32, #tpu.memory_space<vmem>>, %arg6: memref<1x64x128xf32, #tpu.memory_space<vmem>>) attributes {dimension_semantics = [#tpu.dimension_semantics<parallel>], iteration_bounds = array<i64: 2>, scalar_prefetch = 0 : i64, scratch_operands = 0 : i64, tpu.core_type = #tpu.core_type<tc>, window_params = [{transform_indices = @transform_0, window_bounds = array<i64: 1, 64, 128>}, {pipeline_mode = #tpu.pipeline_mode<synchronous>, transform_indices = @transform_1, window_bounds = array<i64: 128, 384>}, {pipeline_mode = #tpu.pipeline_mode<synchronous>, transform_indices = @transform_2, window_bounds = array<i64: 1, 384>}, {pipeline_mode = #tpu.pipeline_mode<synchronous>, transform_indices = @transform_3, window_bounds = array<i64: 128, 128>}, {pipeline_mode = #tpu.pipeline_mode<synchronous>, transform_indices = @transform_4, window_bounds = array<i64: 1, 128>}, {transform_indices = @transform_5, window_bounds = array<i64: 1, 64, 128>}]} {
    %c0 = arith.constant 0 : index
    %c0_0 = arith.constant 0 : index
    %c0_1 = arith.constant 0 : index
    %0 = vector.load %arg1[%c0, %c0_0, %c0_1] : memref<1x64x128xf32, #tpu.memory_space<vmem>>, vector<1x64x128xf32>
    %1 = vector.shape_cast %0 : vector<1x64x128xf32> to vector<64x128xf32>
    %c0_2 = arith.constant 0 : index
    %c0_3 = arith.constant 0 : index
    %2 = vector.load %arg2[%c0_2, %c0_3] : memref<128x384xf32, #tpu.memory_space<vmem>>, vector<128x384xf32>
    %cst = arith.constant dense<0.000000e+00> : vector<64x384xf32>
    %3 = tpu.matmul %1, %2, %cst {dimension_numbers = #tpu.dot_dimension_numbers<[1], [0], [0], [1], [0, 0, 1, 1], [], []>} : vector<64x128xf32>, vector<128x384xf32>, vector<64x384xf32> -> vector<64x384xf32>
    %c0_4 = arith.constant 0 : index
    %c0_5 = arith.constant 0 : index
    %4 = vector.load %arg3[%c0_4, %c0_5] : memref<1x384xf32, #tpu.memory_space<vmem>>, vector<1x384xf32>
    %5 = vector.broadcast %4 : vector<1x384xf32> to vector<64x384xf32>
    %6 = arith.addf %3, %5 : vector<64x384xf32>
    %7 = vector.extract_strided_slice %6 {offsets = [0, 0], sizes = [64, 128], strides = [1, 1]} : vector<64x384xf32> to vector<64x128xf32>
    %cst_6 = arith.constant 0.176776692 : f32
    %8 = vector.broadcast %cst_6 : f32 to vector<64x128xf32>
    %9 = arith.mulf %7, %8 : vector<64x128xf32>
    %10 = vector.extract_strided_slice %6 {offsets = [0, 128], sizes = [64, 128], strides = [1, 1]} : vector<64x384xf32> to vector<64x128xf32>
    %11 = vector.extract_strided_slice %6 {offsets = [0, 256], sizes = [64, 128], strides = [1, 1]} : vector<64x384xf32> to vector<64x128xf32>
    %12 = vector.extract_strided_slice %9 {offsets = [0, 0], sizes = [64, 32], strides = [1, 1]} : vector<64x128xf32> to vector<64x32xf32>
    %13 = vector.extract_strided_slice %10 {offsets = [0, 0], sizes = [64, 32], strides = [1, 1]} : vector<64x128xf32> to vector<64x32xf32>
    %cst_7 = arith.constant dense<0.000000e+00> : vector<64x64xf32>
    %14 = tpu.matmul %12, %13, %cst_7 {dimension_numbers = #tpu.dot_dimension_numbers<[1], [1], [0], [0], [0, 0, 1, 0], [], []>} : vector<64x32xf32>, vector<64x32xf32>, vector<64x64xf32> -> vector<64x64xf32>
    %cst_8 = arith.constant dense<0xFF800000> : vector<64xf32>
    %15 = vector.multi_reduction <maximumf>, %14, %cst_8 [1] : vector<64x64xf32> to vector<64xf32>
    %16 = vector.shape_cast %15 : vector<64xf32> to vector<64x1xf32>
    %17 = vector.broadcast %16 : vector<64x1xf32> to vector<64x64xf32>
    %18 = arith.subf %14, %17 : vector<64x64xf32>
    %19 = math.exp %18 : vector<64x64xf32>
    %cst_9 = arith.constant dense<0.000000e+00> : vector<64xf32>
    %20 = vector.multi_reduction <add>, %19, %cst_9 [1] : vector<64x64xf32> to vector<64xf32>
    %21 = vector.shape_cast %20 : vector<64xf32> to vector<64x1xf32>
    %22 = tpu.reciprocal %21 {approx = true} : vector<64x1xf32> -> vector<64x1xf32>
    %23 = vector.broadcast %22 : vector<64x1xf32> to vector<64x64xf32>
    %24 = arith.mulf %19, %23 : vector<64x64xf32>
    %25 = vector.extract_strided_slice %11 {offsets = [0, 0], sizes = [64, 32], strides = [1, 1]} : vector<64x128xf32> to vector<64x32xf32>
    %cst_10 = arith.constant dense<0.000000e+00> : vector<64x32xf32>
    %26 = tpu.matmul %24, %25, %cst_10 {dimension_numbers = #tpu.dot_dimension_numbers<[1], [0], [0], [1], [0, 0, 1, 1], [], []>} : vector<64x64xf32>, vector<64x32xf32>, vector<64x32xf32> -> vector<64x32xf32>
    %27 = vector.extract_strided_slice %9 {offsets = [0, 32], sizes = [64, 32], strides = [1, 1]} : vector<64x128xf32> to vector<64x32xf32>
    %28 = vector.extract_strided_slice %10 {offsets = [0, 32], sizes = [64, 32], strides = [1, 1]} : vector<64x128xf32> to vector<64x32xf32>
    %cst_11 = arith.constant dense<0.000000e+00> : vector<64x64xf32>
    %29 = tpu.matmul %27, %28, %cst_11 {dimension_numbers = #tpu.dot_dimension_numbers<[1], [1], [0], [0], [0, 0, 1, 0], [], []>} : vector<64x32xf32>, vector<64x32xf32>, vector<64x64xf32> -> vector<64x64xf32>
    %cst_12 = arith.constant dense<0xFF800000> : vector<64xf32>
    %30 = vector.multi_reduction <maximumf>, %29, %cst_12 [1] : vector<64x64xf32> to vector<64xf32>
    %31 = vector.shape_cast %30 : vector<64xf32> to vector<64x1xf32>
    %32 = vector.broadcast %31 : vector<64x1xf32> to vector<64x64xf32>
    %33 = arith.subf %29, %32 : vector<64x64xf32>
    %34 = math.exp %33 : vector<64x64xf32>
    %cst_13 = arith.constant dense<0.000000e+00> : vector<64xf32>
    %35 = vector.multi_reduction <add>, %34, %cst_13 [1] : vector<64x64xf32> to vector<64xf32>
    %36 = vector.shape_cast %35 : vector<64xf32> to vector<64x1xf32>
    %37 = tpu.reciprocal %36 {approx = true} : vector<64x1xf32> -> vector<64x1xf32>
    %38 = vector.broadcast %37 : vector<64x1xf32> to vector<64x64xf32>
    %39 = arith.mulf %34, %38 : vector<64x64xf32>
    %40 = vector.extract_strided_slice %11 {offsets = [0, 32], sizes = [64, 32], strides = [1, 1]} : vector<64x128xf32> to vector<64x32xf32>
    %cst_14 = arith.constant dense<0.000000e+00> : vector<64x32xf32>
    %41 = tpu.matmul %39, %40, %cst_14 {dimension_numbers = #tpu.dot_dimension_numbers<[1], [0], [0], [1], [0, 0, 1, 1], [], []>} : vector<64x64xf32>, vector<64x32xf32>, vector<64x32xf32> -> vector<64x32xf32>
    %42 = vector.extract_strided_slice %9 {offsets = [0, 64], sizes = [64, 32], strides = [1, 1]} : vector<64x128xf32> to vector<64x32xf32>
    %43 = vector.extract_strided_slice %10 {offsets = [0, 64], sizes = [64, 32], strides = [1, 1]} : vector<64x128xf32> to vector<64x32xf32>
    %cst_15 = arith.constant dense<0.000000e+00> : vector<64x64xf32>
    %44 = tpu.matmul %42, %43, %cst_15 {dimension_numbers = #tpu.dot_dimension_numbers<[1], [1], [0], [0], [0, 0, 1, 0], [], []>} : vector<64x32xf32>, vector<64x32xf32>, vector<64x64xf32> -> vector<64x64xf32>
    %cst_16 = arith.constant dense<0xFF800000> : vector<64xf32>
    %45 = vector.multi_reduction <maximumf>, %44, %cst_16 [1] : vector<64x64xf32> to vector<64xf32>
    %46 = vector.shape_cast %45 : vector<64xf32> to vector<64x1xf32>
    %47 = vector.broadcast %46 : vector<64x1xf32> to vector<64x64xf32>
    %48 = arith.subf %44, %47 : vector<64x64xf32>
    %49 = math.exp %48 : vector<64x64xf32>
    %cst_17 = arith.constant dense<0.000000e+00> : vector<64xf32>
    %50 = vector.multi_reduction <add>, %49, %cst_17 [1] : vector<64x64xf32> to vector<64xf32>
    %51 = vector.shape_cast %50 : vector<64xf32> to vector<64x1xf32>
    %52 = tpu.reciprocal %51 {approx = true} : vector<64x1xf32> -> vector<64x1xf32>
    %53 = vector.broadcast %52 : vector<64x1xf32> to vector<64x64xf32>
    %54 = arith.mulf %49, %53 : vector<64x64xf32>
    %55 = vector.extract_strided_slice %11 {offsets = [0, 64], sizes = [64, 32], strides = [1, 1]} : vector<64x128xf32> to vector<64x32xf32>
    %cst_18 = arith.constant dense<0.000000e+00> : vector<64x32xf32>
    %56 = tpu.matmul %54, %55, %cst_18 {dimension_numbers = #tpu.dot_dimension_numbers<[1], [0], [0], [1], [0, 0, 1, 1], [], []>} : vector<64x64xf32>, vector<64x32xf32>, vector<64x32xf32> -> vector<64x32xf32>
    %57 = vector.extract_strided_slice %9 {offsets = [0, 96], sizes = [64, 32], strides = [1, 1]} : vector<64x128xf32> to vector<64x32xf32>
    %58 = vector.extract_strided_slice %10 {offsets = [0, 96], sizes = [64, 32], strides = [1, 1]} : vector<64x128xf32> to vector<64x32xf32>
    %cst_19 = arith.constant dense<0.000000e+00> : vector<64x64xf32>
    %59 = tpu.matmul %57, %58, %cst_19 {dimension_numbers = #tpu.dot_dimension_numbers<[1], [1], [0], [0], [0, 0, 1, 0], [], []>} : vector<64x32xf32>, vector<64x32xf32>, vector<64x64xf32> -> vector<64x64xf32>
    %cst_20 = arith.constant dense<0xFF800000> : vector<64xf32>
    %60 = vector.multi_reduction <maximumf>, %59, %cst_20 [1] : vector<64x64xf32> to vector<64xf32>
    %61 = vector.shape_cast %60 : vector<64xf32> to vector<64x1xf32>
    %62 = vector.broadcast %61 : vector<64x1xf32> to vector<64x64xf32>
    %63 = arith.subf %59, %62 : vector<64x64xf32>
    %64 = math.exp %63 : vector<64x64xf32>
    %cst_21 = arith.constant dense<0.000000e+00> : vector<64xf32>
    %65 = vector.multi_reduction <add>, %64, %cst_21 [1] : vector<64x64xf32> to vector<64xf32>
    %66 = vector.shape_cast %65 : vector<64xf32> to vector<64x1xf32>
    %67 = tpu.reciprocal %66 {approx = true} : vector<64x1xf32> -> vector<64x1xf32>
    %68 = vector.broadcast %67 : vector<64x1xf32> to vector<64x64xf32>
    %69 = arith.mulf %64, %68 : vector<64x64xf32>
    %70 = vector.extract_strided_slice %11 {offsets = [0, 96], sizes = [64, 32], strides = [1, 1]} : vector<64x128xf32> to vector<64x32xf32>
    %cst_22 = arith.constant dense<0.000000e+00> : vector<64x32xf32>
    %71 = tpu.matmul %69, %70, %cst_22 {dimension_numbers = #tpu.dot_dimension_numbers<[1], [0], [0], [1], [0, 0, 1, 1], [], []>} : vector<64x64xf32>, vector<64x32xf32>, vector<64x32xf32> -> vector<64x32xf32>
    %72 = tpu.concatenate %26, %41, %56, %71 in 1 : vector<64x32xf32>, vector<64x32xf32>, vector<64x32xf32>, vector<64x32xf32> -> vector<64x128xf32>
    %c0_23 = arith.constant 0 : index
    %c0_24 = arith.constant 0 : index
    %73 = vector.load %arg4[%c0_23, %c0_24] : memref<128x128xf32, #tpu.memory_space<vmem>>, vector<128x128xf32>
    %cst_25 = arith.constant dense<0.000000e+00> : vector<64x128xf32>
    %74 = tpu.matmul %72, %73, %cst_25 {dimension_numbers = #tpu.dot_dimension_numbers<[1], [0], [0], [1], [0, 0, 1, 1], [], []>} : vector<64x128xf32>, vector<128x128xf32>, vector<64x128xf32> -> vector<64x128xf32>
    %c0_26 = arith.constant 0 : index
    %c0_27 = arith.constant 0 : index
    %75 = vector.load %arg5[%c0_26, %c0_27] : memref<1x128xf32, #tpu.memory_space<vmem>>, vector<1x128xf32>
    %76 = vector.broadcast %75 : vector<1x128xf32> to vector<64x128xf32>
    %77 = arith.addf %74, %76 : vector<64x128xf32>
    %c0_28 = arith.constant 0 : index
    %c0_29 = arith.constant 0 : index
    %c0_30 = arith.constant 0 : index
    %78 = vector.load %arg6[%c0_28, %c0_29, %c0_30] : memref<1x64x128xf32, #tpu.memory_space<vmem>>, vector<1x64x128xf32>
    %79 = vector.shape_cast %78 : vector<1x64x128xf32> to vector<64x128xf32>
    %80 = vector.shape_cast %77 : vector<64x128xf32> to vector<1x64x128xf32>
    tpu.vector_store %arg6[%c0_28, %c0_29, %c0_30], %80 {strides = array<i32>} : memref<1x64x128xf32, #tpu.memory_space<vmem>>, vector<1x64x128xf32>,
    return
  }
  func.func @transform_0(%arg0: i32) -> (i32, i32, i32) {
    %c0_i32 = arith.constant 0 : i32
    %c0_i32_0 = arith.constant 0 : i32
    %c0_i32_1 = arith.constant 0 : i32
    return %arg0, %c0_i32, %c0_i32_0 : i32, i32, i32
  }
  func.func @transform_1(%arg0: i32) -> (i32, i32) {
    %c0_i32 = arith.constant 0 : i32
    %c0_i32_0 = arith.constant 0 : i32
    %c0_i32_1 = arith.constant 0 : i32
    return %c0_i32, %c0_i32_0 : i32, i32
  }
  func.func @transform_2(%arg0: i32) -> (i32, i32) {
    %c0_i32 = arith.constant 0 : i32
    %c0_i32_0 = arith.constant 0 : i32
    %c0_i32_1 = arith.constant 0 : i32
    return %c0_i32, %c0_i32_0 : i32, i32
  }
  func.func @transform_3(%arg0: i32) -> (i32, i32) {
    %c0_i32 = arith.constant 0 : i32
    %c0_i32_0 = arith.constant 0 : i32
    %c0_i32_1 = arith.constant 0 : i32
    return %c0_i32, %c0_i32_0 : i32, i32
  }
  func.func @transform_4(%arg0: i32) -> (i32, i32) {
    %c0_i32 = arith.constant 0 : i32
    %c0_i32_0 = arith.constant 0 : i32
    %c0_i32_1 = arith.constant 0 : i32
    return %c0_i32, %c0_i32_0 : i32, i32
  }
  func.func @transform_5(%arg0: i32) -> (i32, i32, i32) {
    %c0_i32 = arith.constant 0 : i32
    %c0_i32_0 = arith.constant 0 : i32
    %c0_i32_1 = arith.constant 0 : i32
    return %arg0, %c0_i32, %c0_i32_0 : i32, i32, i32
  }
}

</mosaic_0001>

<llo_original>
// kernel: attention.1
$region0: #{attention.1}
  #allocation0 [shape = 'u32[]', space=smem, size = 0x4, offset = 0x4, fixed_abs, tag = 'smem constant byte address 0x4 - core index']
  #allocation1 [shape = 'u32[144,128]{1,0:T(1,128)}', space=vmem, size = 0x12000, scoped, tag = 'internal scratch']
  %s0 = inlined_call_operand.hbm [shape: f32[2,64,128], index: 0, kind: input, shape index: {}]
  %s1 = inlined_call_operand.hbm [shape: f32[128,384], index: 1, kind: input, shape index: {}]
  %s2 = inlined_call_operand.vmem [shape: f32[1,384], index: 2, kind: input, shape index: {}]
  %s3 = inlined_call_operand.hbm [shape: f32[128,128], index: 3, kind: input, shape index: {}]
  %s4 = inlined_call_operand.vmem [shape: f32[1,128], index: 4, kind: input, shape index: {}]
  %s5 = inlined_call_operand.hbm [shape: f32[2,64,128], index: 5, kind: output, shape index: {}]
  %s6 = sld [smem:[#allocation0]]
  $region65: #{attention.1} parent=0
    _
  %s8 = ssub.s32 1, %s6
  %s9 = scalar_select 0, %s8, %s6
  $region1: #{attention.1} parent=0
    #allocation2 [shape = 'u8[65536]{0}', space=vmem, size = 0x10000, scoped, tag = 'input window, operand 0']
    #allocation3 [shape = 's32[2]{0}', space=sflag, size = 0x8, scoped, tag = 'scoped memory for attention.1']
    #allocation4 [shape = 's32[2]{0}', space=sflag, size = 0x8, scoped, tag = 'scoped memory for attention.1']
    #allocation5 [shape = 'u8[196608]{0}', space=vmem, size = 0x30000, scoped, tag = 'input window, operand 1, single buffered']
    #allocation6 [shape = 's32[1]{0}', space=sflag, size = 0x4, scoped, tag = 'scoped memory for attention.1']
    #allocation7 [shape = 'u8[65536]{0}', space=vmem, size = 0x10000, scoped, tag = 'input window, operand 3, single buffered']
    #allocation8 [shape = 'u8[65536]{0}', space=vmem, size = 0x10000, scoped, tag = 'output window, operand 0']
    %10 = vsyncpa [#allocation3], 0
    %s11 = scalar_lea.sflag [#allocation3], 1
    %12 = vsyncpa %s11, 0
    %13 = vsyncpa [#allocation6], 0
    %14 = vsyncpa [#allocation4], 0
    %s15 = scalar_lea.sflag [#allocation4], 1
    %16 = vsyncpa %s15, 0
    loop: start=0, step=1, limit=4
    $region2: #{attention.1} parent=1 // loop_pre_header
      _
    $region3: #{attention.1} parent=1 // loop_header
      %s18 = sphi 0, %s22
      %p19 = scmp.ge.s32.totalorder %s18, 4
      %s28 = sphi 0, %s30
      %s31 = sphi 0, %s28
      %s32 = sphi 0, %s31
      %s48 = sphi 0, %s32
      %s52 = sphi 0, %s52
      %s54 = sphi 0, %s52
      %s55 = sphi 0, %s54
      %s69 = sphi 0, %s55
      %s73 = sphi 0, %s73
      %s75 = sphi 0, %s73
      %s76 = sphi 0, %s75
      %s90 = sphi 0, %s76
      %s94 = sphi 0, %s94
      %s96 = sphi 0, %s94
      %s97 = sphi 0, %s96
      %s111 = sphi 0, %s97
      %s115 = sphi 0, %s115
      %s117 = sphi 0, %s115
      %s118 = sphi 0, %s117
      %s132 = sphi 0, %s118
      %s138 = sphi 0, %s140
      %s141 = sphi 0, %s138
      %s142 = sphi 0, %s141
      %s158 = sphi 0, %s142
    $region4: #{attention.1} parent=1 // loop_header_branch
      %21 = sbr.rel (%p19) target = $region8
    $region5: #{attention.1} parent=1 // loop_body
      %s23 = ssub.s32 %s18, 1
      %s24 = ssub.s32 %s18, 2
      %s25 = sadd.s32 %s18, 1
      %s26 = ssub.s32 %s18, %s25
      %p27 = scmp.eq.s32.totalorder %s26, 0
      %s29 = sadd.s32 %s28, 1
      %s30 = scalar_select %p27, %s28, %s29
      %p33 = pneg %p27
      %p34 = scmp.eq.s32.totalorder %s18, 1
      %p35 = por %p33, %p34
      %p36 = scmp.ne.s32.totalorder %s28, %s31
      %p37 = scmp.eq.s32.totalorder %s18, 0
      %p38 = por %p36, %p37
      %p39 = scmp.ne.s32.totalorder %s28, %s31
      %p40 = scmp.eq.s32.totalorder %s23, 1
      %p41 = por %p39, %p40
      %p42 = scmp.ne.s32.totalorder %s31, %s32
      %p43 = scmp.eq.s32.totalorder %s23, 0
      %p44 = por %p42, %p43
      %p45 = scmp.ne.s32.totalorder %s31, %s32
      %p46 = scmp.eq.s32.totalorder %s24, 1
      %p47 = por %p45, %p46
      %p49 = scmp.ne.s32.totalorder %s32, %s48
      %p50 = scmp.eq.s32.totalorder %s24, 0
      %p51 = por %p49, %p50
      %s53 = sadd.s32 %s52, 1
      %p56 = scmp.eq.s32.totalorder %s18, 1
      %p57 = scmp.ne.s32.totalorder %s52, %s54
      %p58 = scmp.eq.s32.totalorder %s18, 0
      %p59 = por %p57, %p58
      %p60 = scmp.ne.s32.totalorder %s52, %s54
      %p61 = scmp.eq.s32.totalorder %s23, 1
      %p62 = por %p60, %p61
      %p63 = scmp.ne.s32.totalorder %s54, %s55
      %p64 = scmp.eq.s32.totalorder %s23, 0
      %p65 = por %p63, %p64
      %p66 = scmp.ne.s32.totalorder %s54, %s55
      %p67 = scmp.eq.s32.totalorder %s24, 1
      %p68 = por %p66, %p67
      %p70 = scmp.ne.s32.totalorder %s55, %s69
      %p71 = scmp.eq.s32.totalorder %s24, 0
      %p72 = por %p70, %p71
      %s74 = sadd.s32 %s73, 1
      %p77 = scmp.eq.s32.totalorder %s18, 1
      %p78 = scmp.ne.s32.totalorder %s73, %s75
      %p79 = scmp.eq.s32.totalorder %s18, 0
      %p80 = por %p78, %p79
      %p81 = scmp.ne.s32.totalorder %s73, %s75
      %p82 = scmp.eq.s32.totalorder %s23, 1
      %p83 = por %p81, %p82
      %p84 = scmp.ne.s32.totalorder %s75, %s76
      %p85 = scmp.eq.s32.totalorder %s23, 0
      %p86 = por %p84, %p85
      %p87 = scmp.ne.s32.totalorder %s75, %s76
      %p88 = scmp.eq.s32.totalorder %s24, 1
      %p89 = por %p87, %p88
      %p91 = scmp.ne.s32.totalorder %s76, %s90
      %p92 = scmp.eq.s32.totalorder %s24, 0
      %p93 = por %p91, %p92
      %s95 = sadd.s32 %s94, 1
      %p98 = scmp.eq.s32.totalorder %s18, 1
      %p99 = scmp.ne.s32.totalorder %s94, %s96
      %p100 = scmp.eq.s32.totalorder %s18, 0
      %p101 = por %p99, %p100
      %p102 = scmp.ne.s32.totalorder %s94, %s96
      %p103 = scmp.eq.s32.totalorder %s23, 1
      %p104 = por %p102, %p103
      %p105 = scmp.ne.s32.totalorder %s96, %s97
      %p106 = scmp.eq.s32.totalorder %s23, 0
      %p107 = por %p105, %p106
      %p108 = scmp.ne.s32.totalorder %s96, %s97
      %p109 = scmp.eq.s32.totalorder %s24, 1
      %p110 = por %p108, %p109
      %p112 = scmp.ne.s32.totalorder %s97, %s111
      %p113 = scmp.eq.s32.totalorder %s24, 0
      %p114 = por %p112, %p113
      %s116 = sadd.s32 %s115, 1
      %p119 = scmp.eq.s32.totalorder %s18, 1
      %p120 = scmp.ne.s32.totalorder %s115, %s117
      %p121 = scmp.eq.s32.totalorder %s18, 0
      %p122 = por %p120, %p121
      %p123 = scmp.ne.s32.totalorder %s115, %s117
      %p124 = scmp.eq.s32.totalorder %s23, 1
      %p125 = por %p123, %p124
      %p126 = scmp.ne.s32.totalorder %s117, %s118
      %p127 = scmp.eq.s32.totalorder %s23, 0
      %p128 = por %p126, %p127
      %p129 = scmp.ne.s32.totalorder %s117, %s118
      %p130 = scmp.eq.s32.totalorder %s24, 1
      %p131 = por %p129, %p130
      %p133 = scmp.ne.s32.totalorder %s118, %s132
      %p134 = scmp.eq.s32.totalorder %s24, 0
      %p135 = por %p133, %p134
      %s136 = ssub.s32 %s18, %s25
      %p137 = scmp.eq.s32.totalorder %s136, 0
      %s139 = sadd.s32 %s138, 1
      %s140 = scalar_select %p137, %s138, %s139
      %p143 = pneg %p137
      %p144 = scmp.eq.s32.totalorder %s18, 1
      %p145 = por %p143, %p144
      %p146 = scmp.ne.s32.totalorder %s138, %s141
      %p147 = scmp.eq.s32.totalorder %s18, 0
      %p148 = por %p146, %p147
      %p149 = scmp.ne.s32.totalorder %s138, %s141
      %p150 = scmp.eq.s32.totalorder %s23, 1
      %p151 = por %p149, %p150
      %p152 = scmp.ne.s32.totalorder %s141, %s142
      %p153 = scmp.eq.s32.totalorder %s23, 0
      %p154 = por %p152, %p153
      %p155 = scmp.ne.s32.totalorder %s141, %s142
      %p156 = scmp.eq.s32.totalorder %s24, 1
      %p157 = por %p155, %p156
      %p159 = scmp.ne.s32.totalorder %s142, %s158
      %p160 = scmp.eq.s32.totalorder %s24, 0
      %p161 = por %p159, %p160
      %p162 = scmp.le.s32.totalorder 1, %s18
      %p163 = scmp.lt.s32.totalorder %s18, 3
      %p164 = pnand %p162, %p163
      %p165 = pneg %p164
      // Predicated region
      $region9: #{attention.1} parent=5 // pred_check
        _
      $region10: #{attention.1} parent=5 // pred_check_branch
        %167 = sbr.rel (%p164) target = $region12
      $region11: #{attention.1} parent=5 // pred_region
        %s168 = ssub.s32 %s18, 1
        // Predicated region
        $region13: #{attention.1} parent=11 // pred_check
          %p169 = pneg %p65
        $region14: #{attention.1} parent=11 // pred_check_branch
          %171 = sbr.rel (%p169) target = $region16
        $region15: #{attention.1} parent=11 // pred_region
          %s173 = ssub.s32 6144, 6144
          %174 = vsyncadd [#allocation6], %s173
          %s175 = sshll.u32 [#allocation5], 4
          %s176 = int_to_ptr.vmem [resolvable:$true] %s175
          %181 = dma.hbm_to_vmem [thread:$0]  %s1, 6144, %s176, [#allocation6], 384, 384, 24
        $region16: #{attention.1} parent=11 // pred_fallthru
          _
        // Predicated region
        $region17: #{attention.1} parent=11 // pred_check
          %p182 = pneg %p86
        $region18: #{attention.1} parent=11 // pred_check_branch
          %184 = sbr.rel (%p182) target = $region20
        $region19: #{attention.1} parent=11 // pred_region
          _
        $region20: #{attention.1} parent=11 // pred_fallthru
          _
        // Predicated region
        $region21: #{attention.1} parent=11 // pred_check
          %p185 = pneg %p107
        $region22: #{attention.1} parent=11 // pred_check_branch
          %187 = sbr.rel (%p185) target = $region24
        $region23: #{attention.1} parent=11 // pred_region
          %s189 = ssub.s32 2048, 2048
          %190 = vsyncadd [#allocation6], %s189
          %s191 = sshll.u32 [#allocation7], 4
          %s192 = int_to_ptr.vmem [resolvable:$true] %s191
          %197 = dma.hbm_to_vmem [thread:$0]  %s3, 2048, %s192, [#allocation6], 128, 128, 8
        $region24: #{attention.1} parent=11 // pred_fallthru
          _
        // Predicated region
        $region25: #{attention.1} parent=11 // pred_check
          %p198 = pneg %p128
        $region26: #{attention.1} parent=11 // pred_check_branch
          %200 = sbr.rel (%p198) target = $region28
        $region27: #{attention.1} parent=11 // pred_region
          _
        $region28: #{attention.1} parent=11 // pred_fallthru
          _
      $region12: #{attention.1} parent=5 // pred_fallthru
        _
      %p201 = scmp.lt.s32.totalorder %s18, 2
      // Predicated region
      $region29: #{attention.1} parent=5 // pred_check
        %p202 = pneg %p201
      $region30: #{attention.1} parent=5 // pred_check_branch
        %204 = sbr.rel (%p202) target = $region32
      $region31: #{attention.1} parent=5 // pred_region
        // Predicated region
        $region33: #{attention.1} parent=31 // pred_check
          %p205 = pneg %p38
        $region34: #{attention.1} parent=31 // pred_check_branch
          %207 = sbr.rel (%p205) target = $region36
        $region35: #{attention.1} parent=31 // pred_region
          %s208 = sand.u32 %s28, 1
          %s209 = scalar_lea.sflag [#allocation3], %s208
          %s210 = sand.u32 %s28, 1
          %s211 = smul.addr %s210, 64
          %s212 = scalar_lea.vmem [#allocation2], %s211
          %s214 = ssub.s32 1024, 1024
          %215 = vsyncadd %s209, %s214
          %s216 = smul.addr %s18, 8
          %s217 = smul.addr %s216, 128
          %s218 = scalar_lea.hbm %s0, %s217
          %s219 = sshll.u32 %s212, 4
          %s220 = int_to_ptr.vmem [resolvable:$true] %s219
          %225 = dma.hbm_to_vmem [thread:$0]  %s218, 1024, %s220, %s209, 128, 128, 8
        $region36: #{attention.1} parent=31 // pred_fallthru
          _
      $region32: #{attention.1} parent=5 // pred_fallthru
        _
      %p226 = scmp.le.s32.totalorder 1, %s18
      %p227 = scmp.lt.s32.totalorder %s18, 3
      %p228 = pnand %p226, %p227
      %p229 = pneg %p228
      // Predicated region
      $region37: #{attention.1} parent=5 // pred_check
        _
      $region38: #{attention.1} parent=5 // pred_check_branch
        %231 = sbr.rel (%p228) target = $region40
      $region39: #{attention.1} parent=5 // pred_region
        %s232 = ssub.s32 %s18, 1
        %s233 = sand.u32 %s31, 1
        %s234 = scalar_lea.sflag [#allocation3], %s233
        %s235 = sand.u32 %s31, 1
        %s236 = smul.addr %s235, 64
        %s237 = scalar_lea.vmem [#allocation2], %s236
        // Predicated region
        $region41: #{attention.1} parent=39 // pred_check
          %p238 = pneg %p44
        $region42: #{attention.1} parent=39 // pred_check_branch
          %240 = sbr.rel (%p238) target = $region44
        $region43: #{attention.1} parent=39 // pred_region
          %241 = dma.done %s234, 1024
        $region44: #{attention.1} parent=39 // pred_fallthru
          _
        // Predicated region
        $region45: #{attention.1} parent=39 // pred_check
          %p242 = pneg %p65
        $region46: #{attention.1} parent=39 // pred_check_branch
          %244 = sbr.rel (%p242) target = $region48
        $region47: #{attention.1} parent=39 // pred_region
          %245 = dma.done [#allocation6], 6144
        $region48: #{attention.1} parent=39 // pred_fallthru
          _
        // Predicated region
        $region49: #{attention.1} parent=39 // pred_check
          %p246 = pneg %p107
        $region50: #{attention.1} parent=39 // pred_check_branch
          %248 = sbr.rel (%p246) target = $region52
        $region51: #{attention.1} parent=39 // pred_region
          %249 = dma.done [#allocation6], 2048
        $region52: #{attention.1} parent=39 // pred_fallthru
          _
        %s250 = sand.u32 %s31, 1
        %s251 = scalar_lea.sflag [#allocation3], %s250
        %s252 = sand.u32 %s31, 1
        %s253 = smul.addr %s252, 64
        %s254 = scalar_lea.vmem [#allocation2], %s253
        %p255 = pneg %p44
        %p256 = pneg %p41
        %p257 = pneg %p65
        %p258 = pneg %p62
        %p259 = pneg %p86
        %p260 = pneg %p83
        %p261 = pneg %p107
        %p262 = pneg %p104
        %p263 = pneg %p128
        %p264 = pneg %p125
        %p265 = pneg %p154
        %p266 = pneg %p151
        %s267 = sand.u32 %s141, 1
        %s268 = scalar_lea.sflag [#allocation4], %s267
        %s269 = sand.u32 %s141, 1
        %s270 = smul.addr %s269, 64
        %s271 = scalar_lea.vmem [#allocation8], %s270
        %v272 = vld [vmem:[%s237] sm:$0xff]
        %v273 = vld [vmem:[%s237 + $0x8] sm:$0xff]
        %v274 = vld [vmem:[%s237 + $0x10] sm:$0xff]
        %v275 = vld [vmem:[%s237 + $0x18] sm:$0xff]
        %v276 = vld [vmem:[%s237 + $0x20] sm:$0xff]
        %v277 = vld [vmem:[%s237 + $0x28] sm:$0xff]
        %v278 = vld [vmem:[%s237 + $0x30] sm:$0xff]
        %v279 = vld [vmem:[%s237 + $0x38] sm:$0xff]
        %v280 = vld [vmem:[#allocation5] sm:$0xff]
        %v281 = vld [vmem:[#allocation5 + $0x8] sm:$0xff]
        %v282 = vld [vmem:[#allocation5 + $0x10] sm:$0xff]
        %v283 = vld [vmem:[#allocation5 + $0x18] sm:$0xff]
        %v284 = vld [vmem:[#allocation5 + $0x20] sm:$0xff]
        %v285 = vld [vmem:[#allocation5 + $0x28] sm:$0xff]
        %v286 = vld [vmem:[#allocation5 + $0x30] sm:$0xff]
        %v287 = vld [vmem:[#allocation5 + $0x38] sm:$0xff]
        %v288 = vld [vmem:[#allocation5 + $0x40] sm:$0xff]
        %v289 = vld [vmem:[#allocation5 + $0x48] sm:$0xff]
        %v290 = vld [vmem:[#allocation5 + $0x50] sm:$0xff]
        %v291 = vld [vmem:[#allocation5 + $0x58] sm:$0xff]
        %v292 = vld [vmem:[#allocation5 + $0x60] sm:$0xff]
        %v293 = vld [vmem:[#allocation5 + $0x68] sm:$0xff]
        %v294 = vld [vmem:[#allocation5 + $0x70] sm:$0xff]
        %v295 = vld [vmem:[#allocation5 + $0x78] sm:$0xff]
        %v296 = vld [vmem:[#allocation5 + $0x80] sm:$0xff]
        %v297 = vld [vmem:[#allocation5 + $0x88] sm:$0xff]
        %v298 = vld [vmem:[#allocation5 + $0x90] sm:$0xff]
        %v299 = vld [vmem:[#allocation5 + $0x98] sm:$0xff]
        %v300 = vld [vmem:[#allocation5 + $0xa0] sm:$0xff]
        %v301 = vld [vmem:[#allocation5 + $0xa8] sm:$0xff]
        %v302 = vld [vmem:[#allocation5 + $0xb0] sm:$0xff]
        %v303 = vld [vmem:[#allocation5 + $0xb8] sm:$0xff]
        %v304 = vld [vmem:[#allocation5 + $0xc0] sm:$0xff]
        %v305 = vld [vmem:[#allocation5 + $0xc8] sm:$0xff]
        %v306 = vld [vmem:[#allocation5 + $0xd0] sm:$0xff]
        %v307 = vld [vmem:[#allocation5 + $0xd8] sm:$0xff]
        %v308 = vld [vmem:[#allocation5 + $0xe0] sm:$0xff]
        %v309 = vld [vmem:[#allocation5 + $0xe8] sm:$0xff]
        %v310 = vld [vmem:[#allocation5 + $0xf0] sm:$0xff]
        %v311 = vld [vmem:[#allocation5 + $0xf8] sm:$0xff]
        %v312 = vld [vmem:[#allocation5 + $0x100] sm:$0xff]
        %v313 = vld [vmem:[#allocation5 + $0x108] sm:$0xff]
        %v314 = vld [vmem:[#allocation5 + $0x110] sm:$0xff]
        %v315 = vld [vmem:[#allocation5 + $0x118] sm:$0xff]
        %v316 = vld [vmem:[#allocation5 + $0x120] sm:$0xff]
        %v317 = vld [vmem:[#allocation5 + $0x128] sm:$0xff]
        %v318 = vld [vmem:[#allocation5 + $0x130] sm:$0xff]
        %v319 = vld [vmem:[#allocation5 + $0x138] sm:$0xff]
        %v320 = vld [vmem:[#allocation5 + $0x140] sm:$0xff]
        %v321 = vld [vmem:[#allocation5 + $0x148] sm:$0xff]
        %v322 = vld [vmem:[#allocation5 + $0x150] sm:$0xff]
        %v323 = vld [vmem:[#allocation5 + $0x158] sm:$0xff]
        %v324 = vld [vmem:[#allocation5 + $0x160] sm:$0xff]
        %v325 = vld [vmem:[#allocation5 + $0x168] sm:$0xff]
        %v326 = vld [vmem:[#allocation5 + $0x170] sm:$0xff]
        %v327 = vld [vmem:[#allocation5 + $0x178] sm:$0xff]
        %v328 = vld [vmem:[%s2] sm:$0x7]
        %v330 = vlaneseq
        %v331 = vshrl.u32 %v330, 7
        %v332 = vsub.s32 0, %v331
        %v333 = vrot.slane %v328, %v332
        %v334 = vlaneseq
        %v335 = vshrl.u32 %v334, 7
        %v336 = vsub.s32 1, %v335
        %v337 = vrot.slane %v328, %v336
        %v338 = vlaneseq
        %v339 = vshrl.u32 %v338, 7
        %v340 = vsub.s32 2, %v339
        %v341 = vrot.slane %v328, %v340
        %345 = vmatprep.subr.mxu0 %v281
        %346 = vmatpush1.msra.mxu0 %v280
        %347 = vmatprep.subr.mxu0 %v284
        %348 = vmatpush1.msra.mxu0 %v283
        %349 = vmatprep.subr.mxu0 %v287
        %350 = vmatpush1.msra.mxu0 %v286
        %351 = vmatprep.subr.mxu0 %v290
        %352 = vmatpush1.msra.mxu0 %v289
        %353 = vmatprep.subr.mxu0 %v293
        %354 = vmatpush1.msra.mxu0 %v292
        %355 = vmatprep.subr.mxu0 %v296
        %356 = vmatpush1.msra.mxu0 %v295
        %357 = vmatprep.subr.mxu0 %v299
        %358 = vmatpush1.msra.mxu0 %v298
        %359 = vmatprep.subr.mxu0 %v302
        %360 = vmatpush1.msra.mxu0 %v301
        %361 = vmatprep.subr.mxu0 %v305
        %362 = vmatpush1.msra.mxu0 %v304
        %363 = vmatprep.subr.mxu0 %v308
        %364 = vmatpush1.msra.mxu0 %v307
        %365 = vmatprep.subr.mxu0 %v311
        %366 = vmatpush1.msra.mxu0 %v310
        %367 = vmatprep.subr.mxu0 %v314
        %368 = vmatpush1.msra.mxu0 %v313
        %369 = vmatprep.subr.mxu0 %v317
        %370 = vmatpush1.msra.mxu0 %v316
        %371 = vmatprep.subr.mxu0 %v320
        %372 = vmatpush1.msra.mxu0 %v319
        %373 = vmatprep.subr.mxu0 %v323
        %374 = vmatpush1.msra.mxu0 %v322
        %375 = vmatprep.subr.mxu0 %v326
        %376 = vmatpush1.msra.mxu0 %v325
        %377 = vmatprep.subr.mxu0 0.0
        %378 = vmatpush1.msra.mxu0 0.0
        %379 = vmatprep.subr.mxu0 0.0
        %380 = vmatpush1.msra.mxu0 0.0
        %381 = vmatprep.subr.mxu0 0.0
        %382 = vmatpush1.msra.mxu0 0.0
        %383 = vmatprep.subr.mxu0 0.0
        %384 = vmatpush1.msra.mxu0 0.0
        %385 = vmatprep.subr.mxu0 0.0
        %386 = vmatpush1.msra.mxu0 0.0
        %387 = vmatprep.subr.mxu0 0.0
        %388 = vmatpush1.msra.mxu0 0.0
        %389 = vmatprep.subr.mxu0 0.0
        %390 = vmatpush1.msra.mxu0 0.0
        %391 = vmatprep.subr.mxu0 0.0
        %392 = vmatpush1.msra.mxu0 0.0
        %393 = vmatprep.subr.mxu0 0.0
        %394 = vmatpush1.msra.mxu0 0.0
        %395 = vmatprep.subr.mxu0 0.0
        %396 = vmatpush1.msra.mxu0 0.0
        %397 = vmatprep.subr.mxu0 0.0
        %398 = vmatpush1.msra.mxu0 0.0
        %399 = vmatprep.subr.mxu0 0.0
        %400 = vmatpush1.msra.mxu0 0.0
        %401 = vmatprep.subr.mxu0 0.0
        %402 = vmatpush1.msra.mxu0 0.0
        %403 = vmatprep.subr.mxu0 0.0
        %404 = vmatpush1.msra.mxu0 0.0
        %405 = vmatprep.subr.mxu0 0.0
        %406 = vmatpush1.msra.mxu0 0.0
        %407 = vmatprep.subr.mxu0 0.0
        %408 = vmatpush1.msra.mxu0 0.0
        %409 = vmatprep.mubr.f32.mxu0 0.0
        %410 = vmatmul.mubr.f32.gmra.mrb[0].mxu0 %v272
        %v411 = vpop.f32.mrb[0].mxu0
        %v412 = vadd.f32 %v333, %v411
        %v413 = vpop.f32.mrb[0].mxu0
        %v414 = vadd.f32 %v337, %v413
        %415 = vmatprep.mubr.f32.mxu0 0.0
        %416 = vmatmul.mubr.f32.gmra.mrb[0].mxu0 %v273
        %v417 = vpop.f32.mrb[0].mxu0
        %v418 = vadd.f32 %v333, %v417
        %v419 = vpop.f32.mrb[0].mxu0
        %v420 = vadd.f32 %v337, %v419
        %421 = vmatprep.mubr.f32.mxu0 0.0
        %422 = vmatmul.mubr.f32.gmra.mrb[0].mxu0 %v274
        %v423 = vpop.f32.mrb[0].mxu0
        %v424 = vadd.f32 %v333, %v423
        %v425 = vpop.f32.mrb[0].mxu0
        %v426 = vadd.f32 %v337, %v425
        %427 = vmatprep.mubr.f32.mxu0 0.0
        %428 = vmatmul.mubr.f32.gmra.mrb[0].mxu0 %v275
        %v429 = vpop.f32.mrb[0].mxu0
        %v430 = vadd.f32 %v333, %v429
        %v431 = vpop.f32.mrb[0].mxu0
        %v432 = vadd.f32 %v337, %v431
        %433 = vmatprep.mubr.f32.mxu0 0.0
        %434 = vmatmul.mubr.f32.gmra.mrb[0].mxu0 %v276
        %v435 = vpop.f32.mrb[0].mxu0
        %v436 = vadd.f32 %v333, %v435
        %v437 = vpop.f32.mrb[0].mxu0
        %v438 = vadd.f32 %v337, %v437
        %439 = vmatprep.mubr.f32.mxu0 0.0
        %440 = vmatmul.mubr.f32.gmra.mrb[0].mxu0 %v277
        %v441 = vpop.f32.mrb[0].mxu0
        %v442 = vadd.f32 %v333, %v441
        %v443 = vpop.f32.mrb[0].mxu0
        %v444 = vadd.f32 %v337, %v443
        %445 = vmatprep.mubr.f32.mxu0 0.0
        %446 = vmatmul.mubr.f32.gmra.mrb[0].mxu0 %v278
        %v447 = vpop.f32.mrb[0].mxu0
        %v448 = vadd.f32 %v333, %v447
        %v449 = vpop.f32.mrb[0].mxu0
        %v450 = vadd.f32 %v337, %v449
        %451 = vmatprep.mubr.f32.mxu0 0.0
        %452 = vmatmul.mubr.f32.gmra.mrb[0].mxu0 %v279
        %v453 = vpop.f32.mrb[0].mxu0
        %v454 = vadd.f32 %v333, %v453
        %v455 = vpop.f32.mrb[0].mxu0
        %v456 = vadd.f32 %v337, %v455
        %457 = vdwg.mxu0
        %458 = vmatprep.subr.mxu0 0.0
        %459 = vmatpush1.msra.mxu0 %v282
        %460 = vmatprep.subr.mxu0 0.0
        %461 = vmatpush1.msra.mxu0 %v285
        %462 = vmatprep.subr.mxu0 0.0
        %463 = vmatpush1.msra.mxu0 %v288
        %464 = vmatprep.subr.mxu0 0.0
        %465 = vmatpush1.msra.mxu0 %v291
        %466 = vmatprep.subr.mxu0 0.0
        %467 = vmatpush1.msra.mxu0 %v294
        %468 = vmatprep.subr.mxu0 0.0
        %469 = vmatpush1.msra.mxu0 %v297
        %470 = vmatprep.subr.mxu0 0.0
        %471 = vmatpush1.msra.mxu0 %v300
        %472 = vmatprep.subr.mxu0 0.0
        %473 = vmatpush1.msra.mxu0 %v303
        %474 = vmatprep.subr.mxu0 0.0
        %475 = vmatpush1.msra.mxu0 %v306
        %476 = vmatprep.subr.mxu0 0.0
        %477 = vmatpush1.msra.mxu0 %v309
        %478 = vmatprep.subr.mxu0 0.0
        %479 = vmatpush1.msra.mxu0 %v312
        %480 = vmatprep.subr.mxu0 0.0
        %481 = vmatpush1.msra.mxu0 %v315
        %482 = vmatprep.subr.mxu0 0.0
        %483 = vmatpush1.msra.mxu0 %v318
        %484 = vmatprep.subr.mxu0 0.0
        %485 = vmatpush1.msra.mxu0 %v321
        %486 = vmatprep.subr.mxu0 0.0
        %487 = vmatpush1.msra.mxu0 %v324
        %488 = vmatprep.subr.mxu0 0.0
        %489 = vmatpush1.msra.mxu0 %v327
        %490 = vmatprep.subr.mxu0 0.0
        %491 = vmatpush1.msra.mxu0 0.0
        %492 = vmatprep.subr.mxu0 0.0
        %493 = vmatpush1.msra.mxu0 0.0
        %494 = vmatprep.subr.mxu0 0.0
        %495 = vmatpush1.msra.mxu0 0.0
        %496 = vmatprep.subr.mxu0 0.0
        %497 = vmatpush1.msra.mxu0 0.0
        %498 = vmatprep.subr.mxu0 0.0
        %499 = vmatpush1.msra.mxu0 0.0
        %500 = vmatprep.subr.mxu0 0.0
        %501 = vmatpush1.msra.mxu0 0.0
        %502 = vmatprep.subr.mxu0 0.0
        %503 = vmatpush1.msra.mxu0 0.0
        %504 = vmatprep.subr.mxu0 0.0
        %505 = vmatpush1.msra.mxu0 0.0
        %506 = vmatprep.subr.mxu0 0.0
        %507 = vmatpush1.msra.mxu0 0.0
        %508 = vmatprep.subr.mxu0 0.0
        %509 = vmatpush1.msra.mxu0 0.0
        %510 = vmatprep.subr.mxu0 0.0
        %511 = vmatpush1.msra.mxu0 0.0
        %512 = vmatprep.subr.mxu0 0.0
        %513 = vmatpush1.msra.mxu0 0.0
        %514 = vmatprep.subr.mxu0 0.0
        %515 = vmatpush1.msra.mxu0 0.0
        %516 = vmatprep.subr.mxu0 0.0
        %517 = vmatpush1.msra.mxu0 0.0
        %518 = vmatprep.subr.mxu0 0.0
        %519 = vmatpush1.msra.mxu0 0.0
        %520 = vmatprep.subr.mxu0 0.0
        %521 = vmatpush1.msra.mxu0 0.0
        %522 = vmatprep.mubr.f32.mxu0 0.0
        %523 = vmatmul.mubr.f32.gmra.mrb[0].mxu0 %v272
        %v524 = vpop.f32.mrb[0].mxu0
        %v525 = vadd.f32 %v341, %v524
        %v526 = vpop.f32.mrb[0].mxu0
        %527 = vmatprep.mubr.f32.mxu0 0.0
        %528 = vmatmul.mubr.f32.gmra.mrb[0].mxu0 %v273
        %v529 = vpop.f32.mrb[0].mxu0
        %v530 = vadd.f32 %v341, %v529
        %v531 = vpop.f32.mrb[0].mxu0
        %532 = vmatprep.mubr.f32.mxu0 0.0
        %533 = vmatmul.mubr.f32.gmra.mrb[0].mxu0 %v274
        %v534 = vpop.f32.mrb[0].mxu0
        %v535 = vadd.f32 %v341, %v534
        %v536 = vpop.f32.mrb[0].mxu0
        %537 = vmatprep.mubr.f32.mxu0 0.0
        %538 = vmatmul.mubr.f32.gmra.mrb[0].mxu0 %v275
        %v539 = vpop.f32.mrb[0].mxu0
        %v540 = vadd.f32 %v341, %v539
        %v541 = vpop.f32.mrb[0].mxu0
        %542 = vmatprep.mubr.f32.mxu0 0.0
        %543 = vmatmul.mubr.f32.gmra.mrb[0].mxu0 %v276
        %v544 = vpop.f32.mrb[0].mxu0
        %v545 = vadd.f32 %v341, %v544
        %v546 = vpop.f32.mrb[0].mxu0
        %547 = vmatprep.mubr.f32.mxu0 0.0
        %548 = vmatmul.mubr.f32.gmra.mrb[0].mxu0 %v277
        %v549 = vpop.f32.mrb[0].mxu0
        %v550 = vadd.f32 %v341, %v549
        %v551 = vpop.f32.mrb[0].mxu0
        %552 = vmatprep.mubr.f32.mxu0 0.0
        %553 = vmatmul.mubr.f32.gmra.mrb[0].mxu0 %v278
        %v554 = vpop.f32.mrb[0].mxu0
        %v555 = vadd.f32 %v341, %v554
        %v556 = vpop.f32.mrb[0].mxu0
        %557 = vmatprep.mubr.f32.mxu0 0.0
        %558 = vmatmul.mubr.f32.gmra.mrb[0].mxu0 %v279
        %v559 = vpop.f32.mrb[0].mxu0
        %v560 = vadd.f32 %v341, %v559
        %v561 = vpop.f32.mrb[0].mxu0
        %562 = vdwg.mxu0
        %v563 = vmul.f32 %v412, 0.17677669
        %v564 = vmul.f32 %v418, 0.17677669
        %v565 = vmul.f32 %v424, 0.17677669
        %v566 = vmul.f32 %v430, 0.17677669
        %v567 = vmul.f32 %v436, 0.17677669
        %v568 = vmul.f32 %v442, 0.17677669
        %v569 = vmul.f32 %v448, 0.17677669
        %v570 = vmul.f32 %v454, 0.17677669
        %vm571 = vcmask 261120
        %v573 = vsel %vm571, %v563, 0
        %v576 = vsel %vm571, %v564, 0
        %v579 = vsel %vm571, %v565, 0
        %v582 = vsel %vm571, %v566, 0
        %v585 = vsel %vm571, %v567, 0
        %v588 = vsel %vm571, %v568, 0
        %v591 = vsel %vm571, %v569, 0
        %v594 = vsel %vm571, %v570, 0
        %v597 = vsel %vm571, %v414, 0
        %v600 = vsel %vm571, %v420, 0
        %v603 = vsel %vm571, %v426, 0
        %v606 = vsel %vm571, %v432, 0
        %v609 = vsel %vm571, %v438, 0
        %v612 = vsel %vm571, %v444, 0
        %v615 = vsel %vm571, %v450, 0
        %v618 = vsel %vm571, %v456, 0
        %620 = vmatprep.subr.mxu0 0.0
        %621 = vmatpush1.xpose.msra.mxu0 %v597
        %622 = vmatprep.subr.mxu0 0.0
        %623 = vmatpush1.xpose.msra.mxu0 %v600
        %624 = vmatprep.subr.mxu0 0.0
        %625 = vmatpush1.xpose.msra.mxu0 %v603
        %626 = vmatprep.subr.mxu0 0.0
        %627 = vmatpush1.xpose.msra.mxu0 %v606
        %628 = vmatprep.subr.mxu0 0.0
        %629 = vmatpush1.xpose.msra.mxu0 %v609
        %630 = vmatprep.subr.mxu0 0.0
        %631 = vmatpush1.xpose.msra.mxu0 %v612
        %632 = vmatprep.subr.mxu0 0.0
        %633 = vmatpush1.xpose.msra.mxu0 %v615
        %634 = vmatprep.subr.mxu0 0.0
        %635 = vmatpush1.xpose.msra.mxu0 %v618
        %636 = vmatprep.subr.mxu0 0.0
        %637 = vmatpush1.xpose.msra.mxu0 0.0
        %638 = vmatprep.subr.mxu0 0.0
        %639 = vmatpush1.xpose.msra.mxu0 0.0
        %640 = vmatprep.subr.mxu0 0.0
        %641 = vmatpush1.xpose.msra.mxu0 0.0
        %642 = vmatprep.subr.mxu0 0.0
        %643 = vmatpush1.xpose.msra.mxu0 0.0
        %644 = vmatprep.subr.mxu0 0.0
        %645 = vmatpush1.xpose.msra.mxu0 0.0
        %646 = vmatprep.subr.mxu0 0.0
        %647 = vmatpush1.xpose.msra.mxu0 0.0
        %648 = vmatprep.subr.mxu0 0.0
        %649 = vmatpush1.xpose.msra.mxu0 0.0
        %650 = vmatprep.subr.mxu0 0.0
        %651 = vmatpush1.xpose.msra.mxu0 0.0
        %652 = vmatprep.subr.mxu0 0.0
        %653 = vmatpush1.xpose.msra.mxu0 0.0
        %654 = vmatprep.subr.mxu0 0.0
        %655 = vmatpush1.xpose.msra.mxu0 0.0
        %656 = vmatprep.subr.mxu0 0.0
        %657 = vmatpush1.xpose.msra.mxu0 0.0
        %658 = vmatprep.subr.mxu0 0.0
        %659 = vmatpush1.xpose.msra.mxu0 0.0
        %660 = vmatprep.subr.mxu0 0.0
        %661 = vmatpush1.xpose.msra.mxu0 0.0
        %662 = vmatprep.subr.mxu0 0.0
        %663 = vmatpush1.xpose.msra.mxu0 0.0
        %664 = vmatprep.subr.mxu0 0.0
        %665 = vmatpush1.xpose.msra.mxu0 0.0
        %666 = vmatprep.subr.mxu0 0.0
        %667 = vmatpush1.xpose.msra.mxu0 0.0
        %668 = vmatprep.subr.mxu0 0.0
        %669 = vmatpush1.xpose.msra.mxu0 0.0
        %670 = vmatprep.subr.mxu0 0.0
        %671 = vmatpush1.xpose.msra.mxu0 0.0
        %672 = vmatprep.subr.mxu0 0.0
        %673 = vmatpush1.xpose.msra.mxu0 0.0
        %674 = vmatprep.subr.mxu0 0.0
        %675 = vmatpush1.xpose.msra.mxu0 0.0
        %676 = vmatprep.subr.mxu0 0.0
        %677 = vmatpush1.xpose.msra.mxu0 0.0
        %678 = vmatprep.subr.mxu0 0.0
        %679 = vmatpush1.xpose.msra.mxu0 0.0
        %680 = vmatprep.subr.mxu0 0.0
        %681 = vmatpush1.xpose.msra.mxu0 0.0
        %682 = vmatprep.subr.mxu0 0.0
        %683 = vmatpush1.xpose.msra.mxu0 0.0
        %684 = vmatprep.mubr.f32.mxu0 0.0
        %685 = vmatmul.mubr.f32.gmra.mrb[0].mxu0 %v573
        %v686 = vpop.f32.mrb[0].mxu0
        %v687 = vadd.f32 0.0, %v686
        %v688 = vpop.f32.mrb[0].mxu0
        %689 = vmatprep.mubr.f32.mxu0 0.0
        %690 = vmatmul.mubr.f32.gmra.mrb[0].mxu0 %v576
        %v691 = vpop.f32.mrb[0].mxu0
        %v692 = vadd.f32 0.0, %v691
        %v693 = vpop.f32.mrb[0].mxu0
        %694 = vmatprep.mubr.f32.mxu0 0.0
        %695 = vmatmul.mubr.f32.gmra.mrb[0].mxu0 %v579
        %v696 = vpop.f32.mrb[0].mxu0
        %v697 = vadd.f32 0.0, %v696
        %v698 = vpop.f32.mrb[0].mxu0
        %699 = vmatprep.mubr.f32.mxu0 0.0
        %700 = vmatmul.mubr.f32.gmra.mrb[0].mxu0 %v582
        %v701 = vpop.f32.mrb[0].mxu0
        %v702 = vadd.f32 0.0, %v701
        %v703 = vpop.f32.mrb[0].mxu0
        %704 = vmatprep.mubr.f32.mxu0 0.0
        %705 = vmatmul.mubr.f32.gmra.mrb[0].mxu0 %v585
        %v706 = vpop.f32.mrb[0].mxu0
        %v707 = vadd.f32 0.0, %v706
        %v708 = vpop.f32.mrb[0].mxu0
        %709 = vmatprep.mubr.f32.mxu0 0.0
        %710 = vmatmul.mubr.f32.gmra.mrb[0].mxu0 %v588
        %v711 = vpop.f32.mrb[0].mxu0
        %v712 = vadd.f32 0.0, %v711
        %v713 = vpop.f32.mrb[0].mxu0
        %714 = vmatprep.mubr.f32.mxu0 0.0
        %715 = vmatmul.mubr.f32.gmra.mrb[0].mxu0 %v591
        %v716 = vpop.f32.mrb[0].mxu0
        %v717 = vadd.f32 0.0, %v716
        %v718 = vpop.f32.mrb[0].mxu0
        %719 = vmatprep.mubr.f32.mxu0 0.0
        %720 = vmatmul.mubr.f32.gmra.mrb[0].mxu0 %v594
        %v721 = vpop.f32.mrb[0].mxu0
        %v722 = vadd.f32 0.0, %v721
        %v723 = vpop.f32.mrb[0].mxu0
        %724 = vdwg.mxu0
        %vm725 = vcmask 523264
        %v726 = vsel %vm725, %v687, -inf
        %727 = vmax.xlane.f32.xlu0 %v726
        %v728 = vpop.xlane.xlu0 %727
        %v729 = vsel %vm725, %v692, -inf
        %730 = vmax.xlane.f32.xlu0 %v729
        %v731 = vpop.xlane.xlu0 %730
        %v732 = vsel %vm725, %v697, -inf
        %733 = vmax.xlane.f32.xlu0 %v732
        %v734 = vpop.xlane.xlu0 %733
        %v735 = vsel %vm725, %v702, -inf
        %736 = vmax.xlane.f32.xlu0 %v735
        %v737 = vpop.xlane.xlu0 %736
        %v738 = vsel %vm725, %v707, -inf
        %739 = vmax.xlane.f32.xlu0 %v738
        %v740 = vpop.xlane.xlu0 %739
        %v741 = vsel %vm725, %v712, -inf
        %742 = vmax.xlane.f32.xlu0 %v741
        %v743 = vpop.xlane.xlu0 %742
        %v744 = vsel %vm725, %v717, -inf
        %745 = vmax.xlane.f32.xlu0 %v744
        %v746 = vpop.xlane.xlu0 %745
        %v747 = vsel %vm725, %v722, -inf
        %748 = vmax.xlane.f32.xlu0 %v747
        %v749 = vpop.xlane.xlu0 %748
        %v750 = vsub.f32 %v687, %v728
        %v751 = vsub.f32 %v692, %v731
        %v752 = vsub.f32 %v697, %v734
        %v753 = vsub.f32 %v702, %v737
        %v754 = vsub.f32 %v707, %v740
        %v755 = vsub.f32 %v712, %v743
        %v756 = vsub.f32 %v717, %v746
        %v757 = vsub.f32 %v722, %v749
        %v758 = vmul.f32 %v750, 1.442695
        %v759 = vpow.pop %v758
        %v760 = vmul.f32 %v751, 1.442695
        %v761 = vpow.pop %v760
        %v762 = vmul.f32 %v752, 1.442695
        %v763 = vpow.pop %v762
        %v764 = vmul.f32 %v753, 1.442695
        %v765 = vpow.pop %v764
        %v766 = vmul.f32 %v754, 1.442695
        %v767 = vpow.pop %v766
        %v768 = vmul.f32 %v755, 1.442695
        %v769 = vpow.pop %v768
        %v770 = vmul.f32 %v756, 1.442695
        %v771 = vpow.pop %v770
        %v772 = vmul.f32 %v757, 1.442695
        %v773 = vpow.pop %v772
        %v774 = vsel %vm725, %v759, 0.0
        %775 = vadd.xlane.f32.xlu0 %v774
        %v776 = vpop.xlane.xlu0 %775
        %v777 = vsel %vm725, %v761, 0.0
        %778 = vadd.xlane.f32.xlu0 %v777
        %v779 = vpop.xlane.xlu0 %778
        %v780 = vsel %vm725, %v763, 0.0
        %781 = vadd.xlane.f32.xlu0 %v780
        %v782 = vpop.xlane.xlu0 %781
        %v783 = vsel %vm725, %v765, 0.0
        %784 = vadd.xlane.f32.xlu0 %v783
        %v785 = vpop.xlane.xlu0 %784
        %v786 = vsel %vm725, %v767, 0.0
        %787 = vadd.xlane.f32.xlu0 %v786
        %v788 = vpop.xlane.xlu0 %787
        %v789 = vsel %vm725, %v769, 0.0
        %790 = vadd.xlane.f32.xlu0 %v789
        %v791 = vpop.xlane.xlu0 %790
        %v792 = vsel %vm725, %v771, 0.0
        %793 = vadd.xlane.f32.xlu0 %v792
        %v794 = vpop.xlane.xlu0 %793
        %v795 = vsel %vm725, %v773, 0.0
        %796 = vadd.xlane.f32.xlu0 %v795
        %v797 = vpop.xlane.xlu0 %796
        %v798 = vrcp.pop %v776
        %v799 = vrcp.pop %v779
        %v800 = vrcp.pop %v782
        %v801 = vrcp.pop %v785
        %v802 = vrcp.pop %v788
        %v803 = vrcp.pop %v791
        %v804 = vrcp.pop %v794
        %v805 = vrcp.pop %v797
        %v806 = vmul.f32 %v759, %v798
        %v807 = vmul.f32 %v761, %v799
        %v808 = vmul.f32 %v763, %v800
        %v809 = vmul.f32 %v765, %v801
        %v810 = vmul.f32 %v767, %v802
        %v811 = vmul.f32 %v769, %v803
        %v812 = vmul.f32 %v771, %v804
        %v813 = vmul.f32 %v773, %v805
        %v815 = vsel %vm725, %v806, 0
        %v818 = vsel %vm725, %v807, 0
        %v821 = vsel %vm725, %v808, 0
        %v824 = vsel %vm725, %v809, 0
        %v827 = vsel %vm725, %v810, 0
        %v830 = vsel %vm725, %v811, 0
        %v833 = vsel %vm725, %v812, 0
        %v836 = vsel %vm725, %v813, 0
        %838 = vmatprep.subr.mxu0 0.0
        %839 = vmatpush1.msra.mxu0 %v525
        %840 = vmatprep.subr.mxu0 0.0
        %841 = vmatpush1.msra.mxu0 %v530
        %842 = vmatprep.subr.mxu0 0.0
        %843 = vmatpush1.msra.mxu0 %v535
        %844 = vmatprep.subr.mxu0 0.0
        %845 = vmatpush1.msra.mxu0 %v540
        %846 = vmatprep.subr.mxu0 0.0
        %847 = vmatpush1.msra.mxu0 %v545
        %848 = vmatprep.subr.mxu0 0.0
        %849 = vmatpush1.msra.mxu0 %v550
        %850 = vmatprep.subr.mxu0 0.0
        %851 = vmatpush1.msra.mxu0 %v555
        %852 = vmatprep.subr.mxu0 0.0
        %853 = vmatpush1.msra.mxu0 %v560
        %854 = vmatprep.subr.mxu0 0.0
        %855 = vmatpush1.msra.mxu0 0.0
        %856 = vmatprep.subr.mxu0 0.0
        %857 = vmatpush1.msra.mxu0 0.0
        %858 = vmatprep.subr.mxu0 0.0
        %859 = vmatpush1.msra.mxu0 0.0
        %860 = vmatprep.subr.mxu0 0.0
        %861 = vmatpush1.msra.mxu0 0.0
        %862 = vmatprep.subr.mxu0 0.0
        %863 = vmatpush1.msra.mxu0 0.0
        %864 = vmatprep.subr.mxu0 0.0
        %865 = vmatpush1.msra.mxu0 0.0
        %866 = vmatprep.subr.mxu0 0.0
        %867 = vmatpush1.msra.mxu0 0.0
        %868 = vmatprep.subr.mxu0 0.0
        %869 = vmatpush1.msra.mxu0 0.0
        %870 = vmatprep.subr.mxu0 0.0
        %871 = vmatpush1.msra.mxu0 0.0
        %872 = vmatprep.subr.mxu0 0.0
        %873 = vmatpush1.msra.mxu0 0.0
        %874 = vmatprep.subr.mxu0 0.0
        %875 = vmatpush1.msra.mxu0 0.0
        %876 = vmatprep.subr.mxu0 0.0
        %877 = vmatpush1.msra.mxu0 0.0
        %878 = vmatprep.subr.mxu0 0.0
        %879 = vmatpush1.msra.mxu0 0.0
        %880 = vmatprep.subr.mxu0 0.0
        %881 = vmatpush1.msra.mxu0 0.0
        %882 = vmatprep.subr.mxu0 0.0
        %883 = vmatpush1.msra.mxu0 0.0
        %884 = vmatprep.subr.mxu0 0.0
        %885 = vmatpush1.msra.mxu0 0.0
        %886 = vmatprep.subr.mxu0 0.0
        %887 = vmatpush1.msra.mxu0 0.0
        %888 = vmatprep.subr.mxu0 0.0
        %889 = vmatpush1.msra.mxu0 0.0
        %890 = vmatprep.subr.mxu0 0.0
        %891 = vmatpush1.msra.mxu0 0.0
        %892 = vmatprep.subr.mxu0 0.0
        %893 = vmatpush1.msra.mxu0 0.0
        %894 = vmatprep.subr.mxu0 0.0
        %895 = vmatpush1.msra.mxu0 0.0
        %896 = vmatprep.subr.mxu0 0.0
        %897 = vmatpush1.msra.mxu0 0.0
        %898 = vmatprep.subr.mxu0 0.0
        %899 = vmatpush1.msra.mxu0 0.0
        %900 = vmatprep.subr.mxu0 0.0
        %901 = vmatpush1.msra.mxu0 0.0
        %902 = vmatprep.mubr.f32.mxu0 0.0
        %903 = vmatmul.mubr.f32.gmra.mrb[0].mxu0 %v815
        %v904 = vpop.f32.mrb[0].mxu0
        %v905 = vadd.f32 0.0, %v904
        %v906 = vpop.f32.mrb[0].mxu0
        %907 = vmatprep.mubr.f32.mxu0 0.0
        %908 = vmatmul.mubr.f32.gmra.mrb[0].mxu0 %v818
        %v909 = vpop.f32.mrb[0].mxu0
        %v910 = vadd.f32 0.0, %v909
        %v911 = vpop.f32.mrb[0].mxu0
        %912 = vmatprep.mubr.f32.mxu0 0.0
        %913 = vmatmul.mubr.f32.gmra.mrb[0].mxu0 %v821
        %v914 = vpop.f32.mrb[0].mxu0
        %v915 = vadd.f32 0.0, %v914
        %v916 = vpop.f32.mrb[0].mxu0
        %917 = vmatprep.mubr.f32.mxu0 0.0
        %918 = vmatmul.mubr.f32.gmra.mrb[0].mxu0 %v824
        %v919 = vpop.f32.mrb[0].mxu0
        %v920 = vadd.f32 0.0, %v919
        %v921 = vpop.f32.mrb[0].mxu0
        %922 = vmatprep.mubr.f32.mxu0 0.0
        %923 = vmatmul.mubr.f32.gmra.mrb[0].mxu0 %v827
        %v924 = vpop.f32.mrb[0].mxu0
        %v925 = vadd.f32 0.0, %v924
        %v926 = vpop.f32.mrb[0].mxu0
        %927 = vmatprep.mubr.f32.mxu0 0.0
        %928 = vmatmul.mubr.f32.gmra.mrb[0].mxu0 %v830
        %v929 = vpop.f32.mrb[0].mxu0
        %v930 = vadd.f32 0.0, %v929
        %v931 = vpop.f32.mrb[0].mxu0
        %932 = vmatprep.mubr.f32.mxu0 0.0
        %933 = vmatmul.mubr.f32.gmra.mrb[0].mxu0 %v833
        %v934 = vpop.f32.mrb[0].mxu0
        %v935 = vadd.f32 0.0, %v934
        %v936 = vpop.f32.mrb[0].mxu0
        %937 = vmatprep.mubr.f32.mxu0 0.0
        %938 = vmatmul.mubr.f32.gmra.mrb[0].mxu0 %v836
        %v939 = vpop.f32.mrb[0].mxu0
        %v940 = vadd.f32 0.0, %v939
        %v941 = vpop.f32.mrb[0].mxu0
        %942 = vdwg.mxu0
        %943 = vrot.lane.b32.xlu0 %v563, 96
        %v944 = vpop.permute.xlu0 %943
        %945 = vrot.lane.b32.xlu0 %v564, 96
        %v946 = vpop.permute.xlu0 %945
        %947 = vrot.lane.b32.xlu0 %v565, 96
        %v948 = vpop.permute.xlu0 %947
        %949 = vrot.lane.b32.xlu0 %v566, 96
        %v950 = vpop.permute.xlu0 %949
        %951 = vrot.lane.b32.xlu0 %v567, 96
        %v952 = vpop.permute.xlu0 %951
        %953 = vrot.lane.b32.xlu0 %v568, 96
        %v954 = vpop.permute.xlu0 %953
        %955 = vrot.lane.b32.xlu0 %v569, 96
        %v956 = vpop.permute.xlu0 %955
        %957 = vrot.lane.b32.xlu0 %v570, 96
        %v958 = vpop.permute.xlu0 %957
        %959 = vrot.lane.b32.xlu0 %v414, 96
        %v960 = vpop.permute.xlu0 %959
        %961 = vrot.lane.b32.xlu0 %v420, 96
        %v962 = vpop.permute.xlu0 %961
        %963 = vrot.lane.b32.xlu0 %v426, 96
        %v964 = vpop.permute.xlu0 %963
        %965 = vrot.lane.b32.xlu0 %v432, 96
        %v966 = vpop.permute.xlu0 %965
        %967 = vrot.lane.b32.xlu0 %v438, 96
        %v968 = vpop.permute.xlu0 %967
        %969 = vrot.lane.b32.xlu0 %v444, 96
        %v970 = vpop.permute.xlu0 %969
        %971 = vrot.lane.b32.xlu0 %v450, 96
        %v972 = vpop.permute.xlu0 %971
        %973 = vrot.lane.b32.xlu0 %v456, 96
        %v974 = vpop.permute.xlu0 %973
        %v975 = vsel %vm571, %v944, 0
        %v977 = vsel %vm571, %v946, 0
        %v979 = vsel %vm571, %v948, 0
        %v981 = vsel %vm571, %v950, 0
        %v983 = vsel %vm571, %v952, 0
        %v985 = vsel %vm571, %v954, 0
        %v987 = vsel %vm571, %v956, 0
        %v989 = vsel %vm571, %v958, 0
        %v991 = vsel %vm571, %v960, 0
        %v993 = vsel %vm571, %v962, 0
        %v995 = vsel %vm571, %v964, 0
        %v997 = vsel %vm571, %v966, 0
        %v999 = vsel %vm571, %v968, 0
        %v1001 = vsel %vm571, %v970, 0
        %v1003 = vsel %vm571, %v972, 0
        %v1005 = vsel %vm571, %v974, 0
        %1007 = vmatprep.subr.mxu0 0.0
        %1008 = vmatpush1.xpose.msra.mxu0 %v991
        %1009 = vmatprep.subr.mxu0 0.0
        %1010 = vmatpush1.xpose.msra.mxu0 %v993
        %1011 = vmatprep.subr.mxu0 0.0
        %1012 = vmatpush1.xpose.msra.mxu0 %v995
        %1013 = vmatprep.subr.mxu0 0.0
        %1014 = vmatpush1.xpose.msra.mxu0 %v997
        %1015 = vmatprep.subr.mxu0 0.0
        %1016 = vmatpush1.xpose.msra.mxu0 %v999
        %1017 = vmatprep.subr.mxu0 0.0
        %1018 = vmatpush1.xpose.msra.mxu0 %v1001
        %1019 = vmatprep.subr.mxu0 0.0
        %1020 = vmatpush1.xpose.msra.mxu0 %v1003
        %1021 = vmatprep.subr.mxu0 0.0
        %1022 = vmatpush1.xpose.msra.mxu0 %v1005
        %1023 = vmatprep.subr.mxu0 0.0
        %1024 = vmatpush1.xpose.msra.mxu0 0.0
        %1025 = vmatprep.subr.mxu0 0.0
        %1026 = vmatpush1.xpose.msra.mxu0 0.0
        %1027 = vmatprep.subr.mxu0 0.0
        %1028 = vmatpush1.xpose.msra.mxu0 0.0
        %1029 = vmatprep.subr.mxu0 0.0
        %1030 = vmatpush1.xpose.msra.mxu0 0.0
        %1031 = vmatprep.subr.mxu0 0.0
        %1032 = vmatpush1.xpose.msra.mxu0 0.0
        %1033 = vmatprep.subr.mxu0 0.0
        %1034 = vmatpush1.xpose.msra.mxu0 0.0
        %1035 = vmatprep.subr.mxu0 0.0
        %1036 = vmatpush1.xpose.msra.mxu0 0.0
        %1037 = vmatprep.subr.mxu0 0.0
        %1038 = vmatpush1.xpose.msra.mxu0 0.0
        %1039 = vmatprep.subr.mxu0 0.0
        %1040 = vmatpush1.xpose.msra.mxu0 0.0
        %1041 = vmatprep.subr.mxu0 0.0
        %1042 = vmatpush1.xpose.msra.mxu0 0.0
        %1043 = vmatprep.subr.mxu0 0.0
        %1044 = vmatpush1.xpose.msra.mxu0 0.0
        %1045 = vmatprep.subr.mxu0 0.0
        %1046 = vmatpush1.xpose.msra.mxu0 0.0
        %1047 = vmatprep.subr.mxu0 0.0
        %1048 = vmatpush1.xpose.msra.mxu0 0.0
        %1049 = vmatprep.subr.mxu0 0.0
        %1050 = vmatpush1.xpose.msra.mxu0 0.0
        %1051 = vmatprep.subr.mxu0 0.0
        %1052 = vmatpush1.xpose.msra.mxu0 0.0
        %1053 = vmatprep.subr.mxu0 0.0
        %1054 = vmatpush1.xpose.msra.mxu0 0.0
        %1055 = vmatprep.subr.mxu0 0.0
        %1056 = vmatpush1.xpose.msra.mxu0 0.0
        %1057 = vmatprep.subr.mxu0 0.0
        %1058 = vmatpush1.xpose.msra.mxu0 0.0
        %1059 = vmatprep.subr.mxu0 0.0
        %1060 = vmatpush1.xpose.msra.mxu0 0.0
        %1061 = vmatprep.subr.mxu0 0.0
        %1062 = vmatpush1.xpose.msra.mxu0 0.0
        %1063 = vmatprep.subr.mxu0 0.0
        %1064 = vmatpush1.xpose.msra.mxu0 0.0
        %1065 = vmatprep.subr.mxu0 0.0
        %1066 = vmatpush1.xpose.msra.mxu0 0.0
        %1067 = vmatprep.subr.mxu0 0.0
        %1068 = vmatpush1.xpose.msra.mxu0 0.0
        %1069 = vmatprep.subr.mxu0 0.0
        %1070 = vmatpush1.xpose.msra.mxu0 0.0
        %1071 = vmatprep.mubr.f32.mxu0 0.0
        %1072 = vmatmul.mubr.f32.gmra.mrb[0].mxu0 %v975
        %v1073 = vpop.f32.mrb[0].mxu0
        %v1074 = vadd.f32 0.0, %v1073
        %v1075 = vpop.f32.mrb[0].mxu0
        %1076 = vmatprep.mubr.f32.mxu0 0.0
        %1077 = vmatmul.mubr.f32.gmra.mrb[0].mxu0 %v977
        %v1078 = vpop.f32.mrb[0].mxu0
        %v1079 = vadd.f32 0.0, %v1078
        %v1080 = vpop.f32.mrb[0].mxu0
        %1081 = vmatprep.mubr.f32.mxu0 0.0
        %1082 = vmatmul.mubr.f32.gmra.mrb[0].mxu0 %v979
        %v1083 = vpop.f32.mrb[0].mxu0
        %v1084 = vadd.f32 0.0, %v1083
        %v1085 = vpop.f32.mrb[0].mxu0
        %1086 = vmatprep.mubr.f32.mxu0 0.0
        %1087 = vmatmul.mubr.f32.gmra.mrb[0].mxu0 %v981
        %v1088 = vpop.f32.mrb[0].mxu0
        %v1089 = vadd.f32 0.0, %v1088
        %v1090 = vpop.f32.mrb[0].mxu0
        %1091 = vmatprep.mubr.f32.mxu0 0.0
        %1092 = vmatmul.mubr.f32.gmra.mrb[0].mxu0 %v983
        %v1093 = vpop.f32.mrb[0].mxu0
        %v1094 = vadd.f32 0.0, %v1093
        %v1095 = vpop.f32.mrb[0].mxu0
        %1096 = vmatprep.mubr.f32.mxu0 0.0
        %1097 = vmatmul.mubr.f32.gmra.mrb[0].mxu0 %v985
        %v1098 = vpop.f32.mrb[0].mxu0
        %v1099 = vadd.f32 0.0, %v1098
        %v1100 = vpop.f32.mrb[0].mxu0
        %1101 = vmatprep.mubr.f32.mxu0 0.0
        %1102 = vmatmul.mubr.f32.gmra.mrb[0].mxu0 %v987
        %v1103 = vpop.f32.mrb[0].mxu0
        %v1104 = vadd.f32 0.0, %v1103
        %v1105 = vpop.f32.mrb[0].mxu0
        %1106 = vmatprep.mubr.f32.mxu0 0.0
        %1107 = vmatmul.mubr.f32.gmra.mrb[0].mxu0 %v989
        %v1108 = vpop.f32.mrb[0].mxu0
        %v1109 = vadd.f32 0.0, %v1108
        %v1110 = vpop.f32.mrb[0].mxu0
        %1111 = vdwg.mxu0
        %v1112 = vsel %vm725, %v1074, -inf
        %1113 = vmax.xlane.f32.xlu0 %v1112
        %v1114 = vpop.xlane.xlu0 %1113
        %v1115 = vsel %vm725, %v1079, -inf
        %1116 = vmax.xlane.f32.xlu0 %v1115
        %v1117 = vpop.xlane.xlu0 %1116
        %v1118 = vsel %vm725, %v1084, -inf
        %1119 = vmax.xlane.f32.xlu0 %v1118
        %v1120 = vpop.xlane.xlu0 %1119
        %v1121 = vsel %vm725, %v1089, -inf
        %1122 = vmax.xlane.f32.xlu0 %v1121
        %v1123 = vpop.xlane.xlu0 %1122
        %v1124 = vsel %vm725, %v1094, -inf
        %1125 = vmax.xlane.f32.xlu0 %v1124
        %v1126 = vpop.xlane.xlu0 %1125
        %v1127 = vsel %vm725, %v1099, -inf
        %1128 = vmax.xlane.f32.xlu0 %v1127
        %v1129 = vpop.xlane.xlu0 %1128
        %v1130 = vsel %vm725, %v1104, -inf
        %1131 = vmax.xlane.f32.xlu0 %v1130
        %v1132 = vpop.xlane.xlu0 %1131
        %v1133 = vsel %vm725, %v1109, -inf
        %1134 = vmax.xlane.f32.xlu0 %v1133
        %v1135 = vpop.xlane.xlu0 %1134
        %v1136 = vsub.f32 %v1074, %v1114
        %v1137 = vsub.f32 %v1079, %v1117
        %v1138 = vsub.f32 %v1084, %v1120
        %v1139 = vsub.f32 %v1089, %v1123
        %v1140 = vsub.f32 %v1094, %v1126
        %v1141 = vsub.f32 %v1099, %v1129
        %v1142 = vsub.f32 %v1104, %v1132
        %v1143 = vsub.f32 %v1109, %v1135
        %v1144 = vmul.f32 %v1136, 1.442695
        %v1145 = vpow.pop %v1144
        %v1146 = vmul.f32 %v1137, 1.442695
        %v1147 = vpow.pop %v1146
        %v1148 = vmul.f32 %v1138, 1.442695
        %v1149 = vpow.pop %v1148
        %v1150 = vmul.f32 %v1139, 1.442695
        %v1151 = vpow.pop %v1150
        %v1152 = vmul.f32 %v1140, 1.442695
        %v1153 = vpow.pop %v1152
        %v1154 = vmul.f32 %v1141, 1.442695
        %v1155 = vpow.pop %v1154
        %v1156 = vmul.f32 %v1142, 1.442695
        %v1157 = vpow.pop %v1156
        %v1158 = vmul.f32 %v1143, 1.442695
        %v1159 = vpow.pop %v1158
        %v1160 = vsel %vm725, %v1145, 0.0
        %1161 = vadd.xlane.f32.xlu0 %v1160
        %v1162 = vpop.xlane.xlu0 %1161
        %v1163 = vsel %vm725, %v1147, 0.0
        %1164 = vadd.xlane.f32.xlu0 %v1163
        %v1165 = vpop.xlane.xlu0 %1164
        %v1166 = vsel %vm725, %v1149, 0.0
        %1167 = vadd.xlane.f32.xlu0 %v1166
        %v1168 = vpop.xlane.xlu0 %1167
        %v1169 = vsel %vm725, %v1151, 0.0
        %1170 = vadd.xlane.f32.xlu0 %v1169
        %v1171 = vpop.xlane.xlu0 %1170
        %v1172 = vsel %vm725, %v1153, 0.0
        %1173 = vadd.xlane.f32.xlu0 %v1172
        %v1174 = vpop.xlane.xlu0 %1173
        %v1175 = vsel %vm725, %v1155, 0.0
        %1176 = vadd.xlane.f32.xlu0 %v1175
        %v1177 = vpop.xlane.xlu0 %1176
        %v1178 = vsel %vm725, %v1157, 0.0
        %1179 = vadd.xlane.f32.xlu0 %v1178
        %v1180 = vpop.xlane.xlu0 %1179
        %v1181 = vsel %vm725, %v1159, 0.0
        %1182 = vadd.xlane.f32.xlu0 %v1181
        %v1183 = vpop.xlane.xlu0 %1182
        %v1184 = vrcp.pop %v1162
        %v1185 = vrcp.pop %v1165
        %v1186 = vrcp.pop %v1168
        %v1187 = vrcp.pop %v1171
        %v1188 = vrcp.pop %v1174
        %v1189 = vrcp.pop %v1177
        %v1190 = vrcp.pop %v1180
        %v1191 = vrcp.pop %v1183
        %v1192 = vmul.f32 %v1145, %v1184
        %v1193 = vmul.f32 %v1147, %v1185
        %v1194 = vmul.f32 %v1149, %v1186
        %v1195 = vmul.f32 %v1151, %v1187
        %v1196 = vmul.f32 %v1153, %v1188
        %v1197 = vmul.f32 %v1155, %v1189
        %v1198 = vmul.f32 %v1157, %v1190
        %v1199 = vmul.f32 %v1159, %v1191
        %1208 = vrot.lane.b32.xlu0 %v525, 96
        %v1209 = vpop.permute.xlu0 %1208
        %1210 = vrot.lane.b32.xlu0 %v530, 96
        %v1211 = vpop.permute.xlu0 %1210
        %1212 = vrot.lane.b32.xlu0 %v535, 96
        %v1213 = vpop.permute.xlu0 %1212
        %1214 = vrot.lane.b32.xlu0 %v540, 96
        %v1215 = vpop.permute.xlu0 %1214
        %1216 = vrot.lane.b32.xlu0 %v545, 96
        %v1217 = vpop.permute.xlu0 %1216
        %1218 = vrot.lane.b32.xlu0 %v550, 96
        %v1219 = vpop.permute.xlu0 %1218
        %1220 = vrot.lane.b32.xlu0 %v555, 96
        %v1221 = vpop.permute.xlu0 %1220
        %1222 = vrot.lane.b32.xlu0 %v560, 96
        %v1223 = vpop.permute.xlu0 %1222
        %v1233 = vsel %vm725, %v1192, 0
        %v1236 = vsel %vm725, %v1193, 0
        %v1239 = vsel %vm725, %v1194, 0
        %v1242 = vsel %vm725, %v1195, 0
        %v1245 = vsel %vm725, %v1196, 0
        %v1248 = vsel %vm725, %v1197, 0
        %v1251 = vsel %vm725, %v1198, 0
        %v1254 = vsel %vm725, %v1199, 0
        %1256 = vmatprep.subr.mxu0 0.0
        %1257 = vmatpush1.msra.mxu0 %v1209
        %1258 = vmatprep.subr.mxu0 0.0
        %1259 = vmatpush1.msra.mxu0 %v1211
        %1260 = vmatprep.subr.mxu0 0.0
        %1261 = vmatpush1.msra.mxu0 %v1213
        %1262 = vmatprep.subr.mxu0 0.0
        %1263 = vmatpush1.msra.mxu0 %v1215
        %1264 = vmatprep.subr.mxu0 0.0
        %1265 = vmatpush1.msra.mxu0 %v1217
        %1266 = vmatprep.subr.mxu0 0.0
        %1267 = vmatpush1.msra.mxu0 %v1219
        %1268 = vmatprep.subr.mxu0 0.0
        %1269 = vmatpush1.msra.mxu0 %v1221
        %1270 = vmatprep.subr.mxu0 0.0
        %1271 = vmatpush1.msra.mxu0 %v1223
        %1272 = vmatprep.subr.mxu0 0.0
        %1273 = vmatpush1.msra.mxu0 0.0
        %1274 = vmatprep.subr.mxu0 0.0
        %1275 = vmatpush1.msra.mxu0 0.0
        %1276 = vmatprep.subr.mxu0 0.0
        %1277 = vmatpush1.msra.mxu0 0.0
        %1278 = vmatprep.subr.mxu0 0.0
        %1279 = vmatpush1.msra.mxu0 0.0
        %1280 = vmatprep.subr.mxu0 0.0
        %1281 = vmatpush1.msra.mxu0 0.0
        %1282 = vmatprep.subr.mxu0 0.0
        %1283 = vmatpush1.msra.mxu0 0.0
        %1284 = vmatprep.subr.mxu0 0.0
        %1285 = vmatpush1.msra.mxu0 0.0
        %1286 = vmatprep.subr.mxu0 0.0
        %1287 = vmatpush1.msra.mxu0 0.0
        %1288 = vmatprep.subr.mxu0 0.0
        %1289 = vmatpush1.msra.mxu0 0.0
        %1290 = vmatprep.subr.mxu0 0.0
        %1291 = vmatpush1.msra.mxu0 0.0
        %1292 = vmatprep.subr.mxu0 0.0
        %1293 = vmatpush1.msra.mxu0 0.0
        %1294 = vmatprep.subr.mxu0 0.0
        %1295 = vmatpush1.msra.mxu0 0.0
        %1296 = vmatprep.subr.mxu0 0.0
        %1297 = vmatpush1.msra.mxu0 0.0
        %1298 = vmatprep.subr.mxu0 0.0
        %1299 = vmatpush1.msra.mxu0 0.0
        %1300 = vmatprep.subr.mxu0 0.0
        %1301 = vmatpush1.msra.mxu0 0.0
        %1302 = vmatprep.subr.mxu0 0.0
        %1303 = vmatpush1.msra.mxu0 0.0
        %1304 = vmatprep.subr.mxu0 0.0
        %1305 = vmatpush1.msra.mxu0 0.0
        %1306 = vmatprep.subr.mxu0 0.0
        %1307 = vmatpush1.msra.mxu0 0.0
        %1308 = vmatprep.subr.mxu0 0.0
        %1309 = vmatpush1.msra.mxu0 0.0
        %1310 = vmatprep.subr.mxu0 0.0
        %1311 = vmatpush1.msra.mxu0 0.0
        %1312 = vmatprep.subr.mxu0 0.0
        %1313 = vmatpush1.msra.mxu0 0.0
        %1314 = vmatprep.subr.mxu0 0.0
        %1315 = vmatpush1.msra.mxu0 0.0
        %1316 = vmatprep.subr.mxu0 0.0
        %1317 = vmatpush1.msra.mxu0 0.0
        %1318 = vmatprep.subr.mxu0 0.0
        %1319 = vmatpush1.msra.mxu0 0.0
        %1320 = vmatprep.mubr.f32.mxu0 0.0
        %1321 = vmatmul.mubr.f32.gmra.mrb[0].mxu0 %v1233
        %v1322 = vpop.f32.mrb[0].mxu0
        %v1323 = vadd.f32 0.0, %v1322
        %v1324 = vpop.f32.mrb[0].mxu0
        %1325 = vmatprep.mubr.f32.mxu0 0.0
        %1326 = vmatmul.mubr.f32.gmra.mrb[0].mxu0 %v1236
        %v1327 = vpop.f32.mrb[0].mxu0
        %v1328 = vadd.f32 0.0, %v1327
        %v1329 = vpop.f32.mrb[0].mxu0
        %1330 = vmatprep.mubr.f32.mxu0 0.0
        %1331 = vmatmul.mubr.f32.gmra.mrb[0].mxu0 %v1239
        %v1332 = vpop.f32.mrb[0].mxu0
        %v1333 = vadd.f32 0.0, %v1332
        %v1334 = vpop.f32.mrb[0].mxu0
        %1335 = vmatprep.mubr.f32.mxu0 0.0
        %1336 = vmatmul.mubr.f32.gmra.mrb[0].mxu0 %v1242
        %v1337 = vpop.f32.mrb[0].mxu0
        %v1338 = vadd.f32 0.0, %v1337
        %v1339 = vpop.f32.mrb[0].mxu0
        %1340 = vmatprep.mubr.f32.mxu0 0.0
        %1341 = vmatmul.mubr.f32.gmra.mrb[0].mxu0 %v1245
        %v1342 = vpop.f32.mrb[0].mxu0
        %v1343 = vadd.f32 0.0, %v1342
        %v1344 = vpop.f32.mrb[0].mxu0
        %1345 = vmatprep.mubr.f32.mxu0 0.0
        %1346 = vmatmul.mubr.f32.gmra.mrb[0].mxu0 %v1248
        %v1347 = vpop.f32.mrb[0].mxu0
        %v1348 = vadd.f32 0.0, %v1347
        %v1349 = vpop.f32.mrb[0].mxu0
        %1350 = vmatprep.mubr.f32.mxu0 0.0
        %1351 = vmatmul.mubr.f32.gmra.mrb[0].mxu0 %v1251
        %v1352 = vpop.f32.mrb[0].mxu0
        %v1353 = vadd.f32 0.0, %v1352
        %v1354 = vpop.f32.mrb[0].mxu0
        %1355 = vmatprep.mubr.f32.mxu0 0.0
        %1356 = vmatmul.mubr.f32.gmra.mrb[0].mxu0 %v1254
        %v1357 = vpop.f32.mrb[0].mxu0
        %v1358 = vadd.f32 0.0, %v1357
        %v1359 = vpop.f32.mrb[0].mxu0
        %1360 = vdwg.mxu0
        %1361 = vrot.lane.b32.xlu0 %v563, 64
        %v1362 = vpop.permute.xlu0 %1361
        %1363 = vrot.lane.b32.xlu0 %v564, 64
        %v1364 = vpop.permute.xlu0 %1363
        %1365 = vrot.lane.b32.xlu0 %v565, 64
        %v1366 = vpop.permute.xlu0 %1365
        %1367 = vrot.lane.b32.xlu0 %v566, 64
        %v1368 = vpop.permute.xlu0 %1367
        %1369 = vrot.lane.b32.xlu0 %v567, 64
        %v1370 = vpop.permute.xlu0 %1369
        %1371 = vrot.lane.b32.xlu0 %v568, 64
        %v1372 = vpop.permute.xlu0 %1371
        %1373 = vrot.lane.b32.xlu0 %v569, 64
        %v1374 = vpop.permute.xlu0 %1373
        %1375 = vrot.lane.b32.xlu0 %v570, 64
        %v1376 = vpop.permute.xlu0 %1375
        %1377 = vrot.lane.b32.xlu0 %v414, 64
        %v1378 = vpop.permute.xlu0 %1377
        %1379 = vrot.lane.b32.xlu0 %v420, 64
        %v1380 = vpop.permute.xlu0 %1379
        %1381 = vrot.lane.b32.xlu0 %v426, 64
        %v1382 = vpop.permute.xlu0 %1381
        %1383 = vrot.lane.b32.xlu0 %v432, 64
        %v1384 = vpop.permute.xlu0 %1383
        %1385 = vrot.lane.b32.xlu0 %v438, 64
        %v1386 = vpop.permute.xlu0 %1385
        %1387 = vrot.lane.b32.xlu0 %v444, 64
        %v1388 = vpop.permute.xlu0 %1387
        %1389 = vrot.lane.b32.xlu0 %v450, 64
        %v1390 = vpop.permute.xlu0 %1389
        %1391 = vrot.lane.b32.xlu0 %v456, 64
        %v1392 = vpop.permute.xlu0 %1391
        %v1393 = vsel %vm571, %v1362, 0
        %v1395 = vsel %vm571, %v1364, 0
        %v1397 = vsel %vm571, %v1366, 0
        %v1399 = vsel %vm571, %v1368, 0
        %v1401 = vsel %vm571, %v1370, 0
        %v1403 = vsel %vm571, %v1372, 0
        %v1405 = vsel %vm571, %v1374, 0
        %v1407 = vsel %vm571, %v1376, 0
        %v1409 = vsel %vm571, %v1378, 0
        %v1411 = vsel %vm571, %v1380, 0
        %v1413 = vsel %vm571, %v1382, 0
        %v1415 = vsel %vm571, %v1384, 0
        %v1417 = vsel %vm571, %v1386, 0
        %v1419 = vsel %vm571, %v1388, 0
        %v1421 = vsel %vm571, %v1390, 0
        %v1423 = vsel %vm571, %v1392, 0
        %1425 = vmatprep.subr.mxu0 0.0
        %1426 = vmatpush1.xpose.msra.mxu0 %v1409
        %1427 = vmatprep.subr.mxu0 0.0
        %1428 = vmatpush1.xpose.msra.mxu0 %v1411
        %1429 = vmatprep.subr.mxu0 0.0
        %1430 = vmatpush1.xpose.msra.mxu0 %v1413
        %1431 = vmatprep.subr.mxu0 0.0
        %1432 = vmatpush1.xpose.msra.mxu0 %v1415
        %1433 = vmatprep.subr.mxu0 0.0
        %1434 = vmatpush1.xpose.msra.mxu0 %v1417
        %1435 = vmatprep.subr.mxu0 0.0
        %1436 = vmatpush1.xpose.msra.mxu0 %v1419
        %1437 = vmatprep.subr.mxu0 0.0
        %1438 = vmatpush1.xpose.msra.mxu0 %v1421
        %1439 = vmatprep.subr.mxu0 0.0
        %1440 = vmatpush1.xpose.msra.mxu0 %v1423
        %1441 = vmatprep.subr.mxu0 0.0
        %1442 = vmatpush1.xpose.msra.mxu0 0.0
        %1443 = vmatprep.subr.mxu0 0.0
        %1444 = vmatpush1.xpose.msra.mxu0 0.0
        %1445 = vmatprep.subr.mxu0 0.0
        %1446 = vmatpush1.xpose.msra.mxu0 0.0
        %1447 = vmatprep.subr.mxu0 0.0
        %1448 = vmatpush1.xpose.msra.mxu0 0.0
        %1449 = vmatprep.subr.mxu0 0.0
        %1450 = vmatpush1.xpose.msra.mxu0 0.0
        %1451 = vmatprep.subr.mxu0 0.0
        %1452 = vmatpush1.xpose.msra.mxu0 0.0
        %1453 = vmatprep.subr.mxu0 0.0
        %1454 = vmatpush1.xpose.msra.mxu0 0.0
        %1455 = vmatprep.subr.mxu0 0.0
        %1456 = vmatpush1.xpose.msra.mxu0 0.0
        %1457 = vmatprep.subr.mxu0 0.0
        %1458 = vmatpush1.xpose.msra.mxu0 0.0
        %1459 = vmatprep.subr.mxu0 0.0
        %1460 = vmatpush1.xpose.msra.mxu0 0.0
        %1461 = vmatprep.subr.mxu0 0.0
        %1462 = vmatpush1.xpose.msra.mxu0 0.0
        %1463 = vmatprep.subr.mxu0 0.0
        %1464 = vmatpush1.xpose.msra.mxu0 0.0
        %1465 = vmatprep.subr.mxu0 0.0
        %1466 = vmatpush1.xpose.msra.mxu0 0.0
        %1467 = vmatprep.subr.mxu0 0.0
        %1468 = vmatpush1.xpose.msra.mxu0 0.0
        %1469 = vmatprep.subr.mxu0 0.0
        %1470 = vmatpush1.xpose.msra.mxu0 0.0
        %1471 = vmatprep.subr.mxu0 0.0
        %1472 = vmatpush1.xpose.msra.mxu0 0.0
        %1473 = vmatprep.subr.mxu0 0.0
        %1474 = vmatpush1.xpose.msra.mxu0 0.0
        %1475 = vmatprep.subr.mxu0 0.0
        %1476 = vmatpush1.xpose.msra.mxu0 0.0
        %1477 = vmatprep.subr.mxu0 0.0
        %1478 = vmatpush1.xpose.msra.mxu0 0.0
        %1479 = vmatprep.subr.mxu0 0.0
        %1480 = vmatpush1.xpose.msra.mxu0 0.0
        %1481 = vmatprep.subr.mxu0 0.0
        %1482 = vmatpush1.xpose.msra.mxu0 0.0
        %1483 = vmatprep.subr.mxu0 0.0
        %1484 = vmatpush1.xpose.msra.mxu0 0.0
        %1485 = vmatprep.subr.mxu0 0.0
        %1486 = vmatpush1.xpose.msra.mxu0 0.0
        %1487 = vmatprep.subr.mxu0 0.0
        %1488 = vmatpush1.xpose.msra.mxu0 0.0
        %1489 = vmatprep.mubr.f32.mxu0 0.0
        %1490 = vmatmul.mubr.f32.gmra.mrb[0].mxu0 %v1393
        %v1491 = vpop.f32.mrb[0].mxu0
        %v1492 = vadd.f32 0.0, %v1491
        %v1493 = vpop.f32.mrb[0].mxu0
        %1494 = vmatprep.mubr.f32.mxu0 0.0
        %1495 = vmatmul.mubr.f32.gmra.mrb[0].mxu0 %v1395
        %v1496 = vpop.f32.mrb[0].mxu0
        %v1497 = vadd.f32 0.0, %v1496
        %v1498 = vpop.f32.mrb[0].mxu0
        %1499 = vmatprep.mubr.f32.mxu0 0.0
        %1500 = vmatmul.mubr.f32.gmra.mrb[0].mxu0 %v1397
        %v1501 = vpop.f32.mrb[0].mxu0
        %v1502 = vadd.f32 0.0, %v1501
        %v1503 = vpop.f32.mrb[0].mxu0
        %1504 = vmatprep.mubr.f32.mxu0 0.0
        %1505 = vmatmul.mubr.f32.gmra.mrb[0].mxu0 %v1399
        %v1506 = vpop.f32.mrb[0].mxu0
        %v1507 = vadd.f32 0.0, %v1506
        %v1508 = vpop.f32.mrb[0].mxu0
        %1509 = vmatprep.mubr.f32.mxu0 0.0
        %1510 = vmatmul.mubr.f32.gmra.mrb[0].mxu0 %v1401
        %v1511 = vpop.f32.mrb[0].mxu0
        %v1512 = vadd.f32 0.0, %v1511
        %v1513 = vpop.f32.mrb[0].mxu0
        %1514 = vmatprep.mubr.f32.mxu0 0.0
        %1515 = vmatmul.mubr.f32.gmra.mrb[0].mxu0 %v1403
        %v1516 = vpop.f32.mrb[0].mxu0
        %v1517 = vadd.f32 0.0, %v1516
        %v1518 = vpop.f32.mrb[0].mxu0
        %1519 = vmatprep.mubr.f32.mxu0 0.0
        %1520 = vmatmul.mubr.f32.gmra.mrb[0].mxu0 %v1405
        %v1521 = vpop.f32.mrb[0].mxu0
        %v1522 = vadd.f32 0.0, %v1521
        %v1523 = vpop.f32.mrb[0].mxu0
        %1524 = vmatprep.mubr.f32.mxu0 0.0
        %1525 = vmatmul.mubr.f32.gmra.mrb[0].mxu0 %v1407
        %v1526 = vpop.f32.mrb[0].mxu0
        %v1527 = vadd.f32 0.0, %v1526
        %v1528 = vpop.f32.mrb[0].mxu0
        %1529 = vdwg.mxu0
        %v1530 = vsel %vm725, %v1492, -inf
        %1531 = vmax.xlane.f32.xlu0 %v1530
        %v1532 = vpop.xlane.xlu0 %1531
        %v1533 = vsel %vm725, %v1497, -inf
        %1534 = vmax.xlane.f32.xlu0 %v1533
        %v1535 = vpop.xlane.xlu0 %1534
        %v1536 = vsel %vm725, %v1502, -inf
        %1537 = vmax.xlane.f32.xlu0 %v1536
        %v1538 = vpop.xlane.xlu0 %1537
        %v1539 = vsel %vm725, %v1507, -inf
        %1540 = vmax.xlane.f32.xlu0 %v1539
        %v1541 = vpop.xlane.xlu0 %1540
        %v1542 = vsel %vm725, %v1512, -inf
        %1543 = vmax.xlane.f32.xlu0 %v1542
        %v1544 = vpop.xlane.xlu0 %1543
        %v1545 = vsel %vm725, %v1517, -inf
        %1546 = vmax.xlane.f32.xlu0 %v1545
        %v1547 = vpop.xlane.xlu0 %1546
        %v1548 = vsel %vm725, %v1522, -inf
        %1549 = vmax.xlane.f32.xlu0 %v1548
        %v1550 = vpop.xlane.xlu0 %1549
        %v1551 = vsel %vm725, %v1527, -inf
        %1552 = vmax.xlane.f32.xlu0 %v1551
        %v1553 = vpop.xlane.xlu0 %1552
        %v1554 = vsub.f32 %v1492, %v1532
        %v1555 = vsub.f32 %v1497, %v1535
        %v1556 = vsub.f32 %v1502, %v1538
        %v1557 = vsub.f32 %v1507, %v1541
        %v1558 = vsub.f32 %v1512, %v1544
        %v1559 = vsub.f32 %v1517, %v1547
        %v1560 = vsub.f32 %v1522, %v1550
        %v1561 = vsub.f32 %v1527, %v1553
        %v1562 = vmul.f32 %v1554, 1.442695
        %v1563 = vpow.pop %v1562
        %v1564 = vmul.f32 %v1555, 1.442695
        %v1565 = vpow.pop %v1564
        %v1566 = vmul.f32 %v1556, 1.442695
        %v1567 = vpow.pop %v1566
        %v1568 = vmul.f32 %v1557, 1.442695
        %v1569 = vpow.pop %v1568
        %v1570 = vmul.f32 %v1558, 1.442695
        %v1571 = vpow.pop %v1570
        %v1572 = vmul.f32 %v1559, 1.442695
        %v1573 = vpow.pop %v1572
        %v1574 = vmul.f32 %v1560, 1.442695
        %v1575 = vpow.pop %v1574
        %v1576 = vmul.f32 %v1561, 1.442695
        %v1577 = vpow.pop %v1576
        %v1578 = vsel %vm725, %v1563, 0.0
        %1579 = vadd.xlane.f32.xlu0 %v1578
        %v1580 = vpop.xlane.xlu0 %1579
        %v1581 = vsel %vm725, %v1565, 0.0
        %1582 = vadd.xlane.f32.xlu0 %v1581
        %v1583 = vpop.xlane.xlu0 %1582
        %v1584 = vsel %vm725, %v1567, 0.0
        %1585 = vadd.xlane.f32.xlu0 %v1584
        %v1586 = vpop.xlane.xlu0 %1585
        %v1587 = vsel %vm725, %v1569, 0.0
        %1588 = vadd.xlane.f32.xlu0 %v1587
        %v1589 = vpop.xlane.xlu0 %1588
        %v1590 = vsel %vm725, %v1571, 0.0
        %1591 = vadd.xlane.f32.xlu0 %v1590
        %v1592 = vpop.xlane.xlu0 %1591
        %v1593 = vsel %vm725, %v1573, 0.0
        %1594 = vadd.xlane.f32.xlu0 %v1593
        %v1595 = vpop.xlane.xlu0 %1594
        %v1596 = vsel %vm725, %v1575, 0.0
        %1597 = vadd.xlane.f32.xlu0 %v1596
        %v1598 = vpop.xlane.xlu0 %1597
        %v1599 = vsel %vm725, %v1577, 0.0
        %1600 = vadd.xlane.f32.xlu0 %v1599
        %v1601 = vpop.xlane.xlu0 %1600
        %v1602 = vrcp.pop %v1580
        %v1603 = vrcp.pop %v1583
        %v1604 = vrcp.pop %v1586
        %v1605 = vrcp.pop %v1589
        %v1606 = vrcp.pop %v1592
        %v1607 = vrcp.pop %v1595
        %v1608 = vrcp.pop %v1598
        %v1609 = vrcp.pop %v1601
        %v1610 = vmul.f32 %v1563, %v1602
        %v1611 = vmul.f32 %v1565, %v1603
        %v1612 = vmul.f32 %v1567, %v1604
        %v1613 = vmul.f32 %v1569, %v1605
        %v1614 = vmul.f32 %v1571, %v1606
        %v1615 = vmul.f32 %v1573, %v1607
        %v1616 = vmul.f32 %v1575, %v1608
        %v1617 = vmul.f32 %v1577, %v1609
        %1618 = vrot.lane.b32.xlu0 %v525, 64
        %v1619 = vpop.permute.xlu0 %1618
        %1620 = vrot.lane.b32.xlu0 %v530, 64
        %v1621 = vpop.permute.xlu0 %1620
        %1622 = vrot.lane.b32.xlu0 %v535, 64
        %v1623 = vpop.permute.xlu0 %1622
        %1624 = vrot.lane.b32.xlu0 %v540, 64
        %v1625 = vpop.permute.xlu0 %1624
        %1626 = vrot.lane.b32.xlu0 %v545, 64
        %v1627 = vpop.permute.xlu0 %1626
        %1628 = vrot.lane.b32.xlu0 %v550, 64
        %v1629 = vpop.permute.xlu0 %1628
        %1630 = vrot.lane.b32.xlu0 %v555, 64
        %v1631 = vpop.permute.xlu0 %1630
        %1632 = vrot.lane.b32.xlu0 %v560, 64
        %v1633 = vpop.permute.xlu0 %1632
        %v1643 = vsel %vm725, %v1610, 0
        %v1646 = vsel %vm725, %v1611, 0
        %v1649 = vsel %vm725, %v1612, 0
        %v1652 = vsel %vm725, %v1613, 0
        %v1655 = vsel %vm725, %v1614, 0
        %v1658 = vsel %vm725, %v1615, 0
        %v1661 = vsel %vm725, %v1616, 0
        %v1664 = vsel %vm725, %v1617, 0
        %1666 = vmatprep.subr.mxu0 0.0
        %1667 = vmatpush1.msra.mxu0 %v1619
        %1668 = vmatprep.subr.mxu0 0.0
        %1669 = vmatpush1.msra.mxu0 %v1621
        %1670 = vmatprep.subr.mxu0 0.0
        %1671 = vmatpush1.msra.mxu0 %v1623
        %1672 = vmatprep.subr.mxu0 0.0
        %1673 = vmatpush1.msra.mxu0 %v1625
        %1674 = vmatprep.subr.mxu0 0.0
        %1675 = vmatpush1.msra.mxu0 %v1627
        %1676 = vmatprep.subr.mxu0 0.0
        %1677 = vmatpush1.msra.mxu0 %v1629
        %1678 = vmatprep.subr.mxu0 0.0
        %1679 = vmatpush1.msra.mxu0 %v1631
        %1680 = vmatprep.subr.mxu0 0.0
        %1681 = vmatpush1.msra.mxu0 %v1633
        %1682 = vmatprep.subr.mxu0 0.0
        %1683 = vmatpush1.msra.mxu0 0.0
        %1684 = vmatprep.subr.mxu0 0.0
        %1685 = vmatpush1.msra.mxu0 0.0
        %1686 = vmatprep.subr.mxu0 0.0
        %1687 = vmatpush1.msra.mxu0 0.0
        %1688 = vmatprep.subr.mxu0 0.0
        %1689 = vmatpush1.msra.mxu0 0.0
        %1690 = vmatprep.subr.mxu0 0.0
        %1691 = vmatpush1.msra.mxu0 0.0
        %1692 = vmatprep.subr.mxu0 0.0
        %1693 = vmatpush1.msra.mxu0 0.0
        %1694 = vmatprep.subr.mxu0 0.0
        %1695 = vmatpush1.msra.mxu0 0.0
        %1696 = vmatprep.subr.mxu0 0.0
        %1697 = vmatpush1.msra.mxu0 0.0
        %1698 = vmatprep.subr.mxu0 0.0
        %1699 = vmatpush1.msra.mxu0 0.0
        %1700 = vmatprep.subr.mxu0 0.0
        %1701 = vmatpush1.msra.mxu0 0.0
        %1702 = vmatprep.subr.mxu0 0.0
        %1703 = vmatpush1.msra.mxu0 0.0
        %1704 = vmatprep.subr.mxu0 0.0
        %1705 = vmatpush1.msra.mxu0 0.0
        %1706 = vmatprep.subr.mxu0 0.0
        %1707 = vmatpush1.msra.mxu0 0.0
        %1708 = vmatprep.subr.mxu0 0.0
        %1709 = vmatpush1.msra.mxu0 0.0
        %1710 = vmatprep.subr.mxu0 0.0
        %1711 = vmatpush1.msra.mxu0 0.0
        %1712 = vmatprep.subr.mxu0 0.0
        %1713 = vmatpush1.msra.mxu0 0.0
        %1714 = vmatprep.subr.mxu0 0.0
        %1715 = vmatpush1.msra.mxu0 0.0
        %1716 = vmatprep.subr.mxu0 0.0
        %1717 = vmatpush1.msra.mxu0 0.0
        %1718 = vmatprep.subr.mxu0 0.0
        %1719 = vmatpush1.msra.mxu0 0.0
        %1720 = vmatprep.subr.mxu0 0.0
        %1721 = vmatpush1.msra.mxu0 0.0
        %1722 = vmatprep.subr.mxu0 0.0
        %1723 = vmatpush1.msra.mxu0 0.0
        %1724 = vmatprep.subr.mxu0 0.0
        %1725 = vmatpush1.msra.mxu0 0.0
        %1726 = vmatprep.subr.mxu0 0.0
        %1727 = vmatpush1.msra.mxu0 0.0
        %1728 = vmatprep.subr.mxu0 0.0
        %1729 = vmatpush1.msra.mxu0 0.0
        %1730 = vmatprep.mubr.f32.mxu0 0.0
        %1731 = vmatmul.mubr.f32.gmra.mrb[0].mxu0 %v1643
        %v1732 = vpop.f32.mrb[0].mxu0
        %v1733 = vadd.f32 0.0, %v1732
        %v1734 = vpop.f32.mrb[0].mxu0
        %1735 = vmatprep.mubr.f32.mxu0 0.0
        %1736 = vmatmul.mubr.f32.gmra.mrb[0].mxu0 %v1646
        %v1737 = vpop.f32.mrb[0].mxu0
        %v1738 = vadd.f32 0.0, %v1737
        %v1739 = vpop.f32.mrb[0].mxu0
        %1740 = vmatprep.mubr.f32.mxu0 0.0
        %1741 = vmatmul.mubr.f32.gmra.mrb[0].mxu0 %v1649
        %v1742 = vpop.f32.mrb[0].mxu0
        %v1743 = vadd.f32 0.0, %v1742
        %v1744 = vpop.f32.mrb[0].mxu0
        %1745 = vmatprep.mubr.f32.mxu0 0.0
        %1746 = vmatmul.mubr.f32.gmra.mrb[0].mxu0 %v1652
        %v1747 = vpop.f32.mrb[0].mxu0
        %v1748 = vadd.f32 0.0, %v1747
        %v1749 = vpop.f32.mrb[0].mxu0
        %1750 = vmatprep.mubr.f32.mxu0 0.0
        %1751 = vmatmul.mubr.f32.gmra.mrb[0].mxu0 %v1655
        %v1752 = vpop.f32.mrb[0].mxu0
        %v1753 = vadd.f32 0.0, %v1752
        %v1754 = vpop.f32.mrb[0].mxu0
        %1755 = vmatprep.mubr.f32.mxu0 0.0
        %1756 = vmatmul.mubr.f32.gmra.mrb[0].mxu0 %v1658
        %v1757 = vpop.f32.mrb[0].mxu0
        %v1758 = vadd.f32 0.0, %v1757
        %v1759 = vpop.f32.mrb[0].mxu0
        %1760 = vmatprep.mubr.f32.mxu0 0.0
        %1761 = vmatmul.mubr.f32.gmra.mrb[0].mxu0 %v1661
        %v1762 = vpop.f32.mrb[0].mxu0
        %v1763 = vadd.f32 0.0, %v1762
        %v1764 = vpop.f32.mrb[0].mxu0
        %1765 = vmatprep.mubr.f32.mxu0 0.0
        %1766 = vmatmul.mubr.f32.gmra.mrb[0].mxu0 %v1664
        %v1767 = vpop.f32.mrb[0].mxu0
        %v1768 = vadd.f32 0.0, %v1767
        %v1769 = vpop.f32.mrb[0].mxu0
        %1770 = vdwg.mxu0
        %1771 = vrot.lane.b32.xlu0 %v563, 32
        %v1772 = vpop.permute.xlu0 %1771
        %1773 = vrot.lane.b32.xlu0 %v564, 32
        %v1774 = vpop.permute.xlu0 %1773
        %1775 = vrot.lane.b32.xlu0 %v565, 32
        %v1776 = vpop.permute.xlu0 %1775
        %1777 = vrot.lane.b32.xlu0 %v566, 32
        %v1778 = vpop.permute.xlu0 %1777
        %1779 = vrot.lane.b32.xlu0 %v567, 32
        %v1780 = vpop.permute.xlu0 %1779
        %1781 = vrot.lane.b32.xlu0 %v568, 32
        %v1782 = vpop.permute.xlu0 %1781
        %1783 = vrot.lane.b32.xlu0 %v569, 32
        %v1784 = vpop.permute.xlu0 %1783
        %1785 = vrot.lane.b32.xlu0 %v570, 32
        %v1786 = vpop.permute.xlu0 %1785
        %1787 = vrot.lane.b32.xlu0 %v414, 32
        %v1788 = vpop.permute.xlu0 %1787
        %1789 = vrot.lane.b32.xlu0 %v420, 32
        %v1790 = vpop.permute.xlu0 %1789
        %1791 = vrot.lane.b32.xlu0 %v426, 32
        %v1792 = vpop.permute.xlu0 %1791
        %1793 = vrot.lane.b32.xlu0 %v432, 32
        %v1794 = vpop.permute.xlu0 %1793
        %1795 = vrot.lane.b32.xlu0 %v438, 32
        %v1796 = vpop.permute.xlu0 %1795
        %1797 = vrot.lane.b32.xlu0 %v444, 32
        %v1798 = vpop.permute.xlu0 %1797
        %1799 = vrot.lane.b32.xlu0 %v450, 32
        %v1800 = vpop.permute.xlu0 %1799
        %1801 = vrot.lane.b32.xlu0 %v456, 32
        %v1802 = vpop.permute.xlu0 %1801
        %v1803 = vsel %vm571, %v1772, 0
        %v1805 = vsel %vm571, %v1774, 0
        %v1807 = vsel %vm571, %v1776, 0
        %v1809 = vsel %vm571, %v1778, 0
        %v1811 = vsel %vm571, %v1780, 0
        %v1813 = vsel %vm571, %v1782, 0
        %v1815 = vsel %vm571, %v1784, 0
        %v1817 = vsel %vm571, %v1786, 0
        %v1819 = vsel %vm571, %v1788, 0
        %v1821 = vsel %vm571, %v1790, 0
        %v1823 = vsel %vm571, %v1792, 0
        %v1825 = vsel %vm571, %v1794, 0
        %v1827 = vsel %vm571, %v1796, 0
        %v1829 = vsel %vm571, %v1798, 0
        %v1831 = vsel %vm571, %v1800, 0
        %v1833 = vsel %vm571, %v1802, 0
        %1835 = vmatprep.subr.mxu0 0.0
        %1836 = vmatpush1.xpose.msra.mxu0 %v1819
        %1837 = vmatprep.subr.mxu0 0.0
        %1838 = vmatpush1.xpose.msra.mxu0 %v1821
        %1839 = vmatprep.subr.mxu0 0.0
        %1840 = vmatpush1.xpose.msra.mxu0 %v1823
        %1841 = vmatprep.subr.mxu0 0.0
        %1842 = vmatpush1.xpose.msra.mxu0 %v1825
        %1843 = vmatprep.subr.mxu0 0.0
        %1844 = vmatpush1.xpose.msra.mxu0 %v1827
        %1845 = vmatprep.subr.mxu0 0.0
        %1846 = vmatpush1.xpose.msra.mxu0 %v1829
        %1847 = vmatprep.subr.mxu0 0.0
        %1848 = vmatpush1.xpose.msra.mxu0 %v1831
        %1849 = vmatprep.subr.mxu0 0.0
        %1850 = vmatpush1.xpose.msra.mxu0 %v1833
        %1851 = vmatprep.subr.mxu0 0.0
        %1852 = vmatpush1.xpose.msra.mxu0 0.0
        %1853 = vmatprep.subr.mxu0 0.0
        %1854 = vmatpush1.xpose.msra.mxu0 0.0
        %1855 = vmatprep.subr.mxu0 0.0
        %1856 = vmatpush1.xpose.msra.mxu0 0.0
        %1857 = vmatprep.subr.mxu0 0.0
        %1858 = vmatpush1.xpose.msra.mxu0 0.0
        %1859 = vmatprep.subr.mxu0 0.0
        %1860 = vmatpush1.xpose.msra.mxu0 0.0
        %1861 = vmatprep.subr.mxu0 0.0
        %1862 = vmatpush1.xpose.msra.mxu0 0.0
        %1863 = vmatprep.subr.mxu0 0.0
        %1864 = vmatpush1.xpose.msra.mxu0 0.0
        %1865 = vmatprep.subr.mxu0 0.0
        %1866 = vmatpush1.xpose.msra.mxu0 0.0
        %1867 = vmatprep.subr.mxu0 0.0
        %1868 = vmatpush1.xpose.msra.mxu0 0.0
        %1869 = vmatprep.subr.mxu0 0.0
        %1870 = vmatpush1.xpose.msra.mxu0 0.0
        %1871 = vmatprep.subr.mxu0 0.0
        %1872 = vmatpush1.xpose.msra.mxu0 0.0
        %1873 = vmatprep.subr.mxu0 0.0
        %1874 = vmatpush1.xpose.msra.mxu0 0.0
        %1875 = vmatprep.subr.mxu0 0.0
        %1876 = vmatpush1.xpose.msra.mxu0 0.0
        %1877 = vmatprep.subr.mxu0 0.0
        %1878 = vmatpush1.xpose.msra.mxu0 0.0
        %1879 = vmatprep.subr.mxu0 0.0
        %1880 = vmatpush1.xpose.msra.mxu0 0.0
        %1881 = vmatprep.subr.mxu0 0.0
        %1882 = vmatpush1.xpose.msra.mxu0 0.0
        %1883 = vmatprep.subr.mxu0 0.0
        %1884 = vmatpush1.xpose.msra.mxu0 0.0
        %1885 = vmatprep.subr.mxu0 0.0
        %1886 = vmatpush1.xpose.msra.mxu0 0.0
        %1887 = vmatprep.subr.mxu0 0.0
        %1888 = vmatpush1.xpose.msra.mxu0 0.0
        %1889 = vmatprep.subr.mxu0 0.0
        %1890 = vmatpush1.xpose.msra.mxu0 0.0
        %1891 = vmatprep.subr.mxu0 0.0
        %1892 = vmatpush1.xpose.msra.mxu0 0.0
        %1893 = vmatprep.subr.mxu0 0.0
        %1894 = vmatpush1.xpose.msra.mxu0 0.0
        %1895 = vmatprep.subr.mxu0 0.0
        %1896 = vmatpush1.xpose.msra.mxu0 0.0
        %1897 = vmatprep.subr.mxu0 0.0
        %1898 = vmatpush1.xpose.msra.mxu0 0.0
        %1899 = vmatprep.mubr.f32.mxu0 0.0
        %1900 = vmatmul.mubr.f32.gmra.mrb[0].mxu0 %v1803
        %v1901 = vpop.f32.mrb[0].mxu0
        %v1902 = vadd.f32 0.0, %v1901
        %v1903 = vpop.f32.mrb[0].mxu0
        %1904 = vmatprep.mubr.f32.mxu0 0.0
        %1905 = vmatmul.mubr.f32.gmra.mrb[0].mxu0 %v1805
        %v1906 = vpop.f32.mrb[0].mxu0
        %v1907 = vadd.f32 0.0, %v1906
        %v1908 = vpop.f32.mrb[0].mxu0
        %1909 = vmatprep.mubr.f32.mxu0 0.0
        %1910 = vmatmul.mubr.f32.gmra.mrb[0].mxu0 %v1807
        %v1911 = vpop.f32.mrb[0].mxu0
        %v1912 = vadd.f32 0.0, %v1911
        %v1913 = vpop.f32.mrb[0].mxu0
        %1914 = vmatprep.mubr.f32.mxu0 0.0
        %1915 = vmatmul.mubr.f32.gmra.mrb[0].mxu0 %v1809
        %v1916 = vpop.f32.mrb[0].mxu0
        %v1917 = vadd.f32 0.0, %v1916
        %v1918 = vpop.f32.mrb[0].mxu0
        %1919 = vmatprep.mubr.f32.mxu0 0.0
        %1920 = vmatmul.mubr.f32.gmra.mrb[0].mxu0 %v1811
        %v1921 = vpop.f32.mrb[0].mxu0
        %v1922 = vadd.f32 0.0, %v1921
        %v1923 = vpop.f32.mrb[0].mxu0
        %1924 = vmatprep.mubr.f32.mxu0 0.0
        %1925 = vmatmul.mubr.f32.gmra.mrb[0].mxu0 %v1813
        %v1926 = vpop.f32.mrb[0].mxu0
        %v1927 = vadd.f32 0.0, %v1926
        %v1928 = vpop.f32.mrb[0].mxu0
        %1929 = vmatprep.mubr.f32.mxu0 0.0
        %1930 = vmatmul.mubr.f32.gmra.mrb[0].mxu0 %v1815
        %v1931 = vpop.f32.mrb[0].mxu0
        %v1932 = vadd.f32 0.0, %v1931
        %v1933 = vpop.f32.mrb[0].mxu0
        %1934 = vmatprep.mubr.f32.mxu0 0.0
        %1935 = vmatmul.mubr.f32.gmra.mrb[0].mxu0 %v1817
        %v1936 = vpop.f32.mrb[0].mxu0
        %v1937 = vadd.f32 0.0, %v1936
        %v1938 = vpop.f32.mrb[0].mxu0
        %1939 = vdwg.mxu0
        %v1940 = vsel %vm725, %v1902, -inf
        %1941 = vmax.xlane.f32.xlu0 %v1940
        %v1942 = vpop.xlane.xlu0 %1941
        %v1943 = vsel %vm725, %v1907, -inf
        %1944 = vmax.xlane.f32.xlu0 %v1943
        %v1945 = vpop.xlane.xlu0 %1944
        %v1946 = vsel %vm725, %v1912, -inf
        %1947 = vmax.xlane.f32.xlu0 %v1946
        %v1948 = vpop.xlane.xlu0 %1947
        %v1949 = vsel %vm725, %v1917, -inf
        %1950 = vmax.xlane.f32.xlu0 %v1949
        %v1951 = vpop.xlane.xlu0 %1950
        %v1952 = vsel %vm725, %v1922, -inf
        %1953 = vmax.xlane.f32.xlu0 %v1952
        %v1954 = vpop.xlane.xlu0 %1953
        %v1955 = vsel %vm725, %v1927, -inf
        %1956 = vmax.xlane.f32.xlu0 %v1955
        %v1957 = vpop.xlane.xlu0 %1956
        %v1958 = vsel %vm725, %v1932, -inf
        %1959 = vmax.xlane.f32.xlu0 %v1958
        %v1960 = vpop.xlane.xlu0 %1959
        %v1961 = vsel %vm725, %v1937, -inf
        %1962 = vmax.xlane.f32.xlu0 %v1961
        %v1963 = vpop.xlane.xlu0 %1962
        %v1964 = vsub.f32 %v1902, %v1942
        %v1965 = vsub.f32 %v1907, %v1945
        %v1966 = vsub.f32 %v1912, %v1948
        %v1967 = vsub.f32 %v1917, %v1951
        %v1968 = vsub.f32 %v1922, %v1954
        %v1969 = vsub.f32 %v1927, %v1957
        %v1970 = vsub.f32 %v1932, %v1960
        %v1971 = vsub.f32 %v1937, %v1963
        %v1972 = vmul.f32 %v1964, 1.442695
        %v1973 = vpow.pop %v1972
        %v1974 = vmul.f32 %v1965, 1.442695
        %v1975 = vpow.pop %v1974
        %v1976 = vmul.f32 %v1966, 1.442695
        %v1977 = vpow.pop %v1976
        %v1978 = vmul.f32 %v1967, 1.442695
        %v1979 = vpow.pop %v1978
        %v1980 = vmul.f32 %v1968, 1.442695
        %v1981 = vpow.pop %v1980
        %v1982 = vmul.f32 %v1969, 1.442695
        %v1983 = vpow.pop %v1982
        %v1984 = vmul.f32 %v1970, 1.442695
        %v1985 = vpow.pop %v1984
        %v1986 = vmul.f32 %v1971, 1.442695
        %v1987 = vpow.pop %v1986
        %v1988 = vsel %vm725, %v1973, 0.0
        %1989 = vadd.xlane.f32.xlu0 %v1988
        %v1990 = vpop.xlane.xlu0 %1989
        %v1991 = vsel %vm725, %v1975, 0.0
        %1992 = vadd.xlane.f32.xlu0 %v1991
        %v1993 = vpop.xlane.xlu0 %1992
        %v1994 = vsel %vm725, %v1977, 0.0
        %1995 = vadd.xlane.f32.xlu0 %v1994
        %v1996 = vpop.xlane.xlu0 %1995
        %v1997 = vsel %vm725, %v1979, 0.0
        %1998 = vadd.xlane.f32.xlu0 %v1997
        %v1999 = vpop.xlane.xlu0 %1998
        %v2000 = vsel %vm725, %v1981, 0.0
        %2001 = vadd.xlane.f32.xlu0 %v2000
        %v2002 = vpop.xlane.xlu0 %2001
        %v2003 = vsel %vm725, %v1983, 0.0
        %2004 = vadd.xlane.f32.xlu0 %v2003
        %v2005 = vpop.xlane.xlu0 %2004
        %v2006 = vsel %vm725, %v1985, 0.0
        %2007 = vadd.xlane.f32.xlu0 %v2006
        %v2008 = vpop.xlane.xlu0 %2007
        %v2009 = vsel %vm725, %v1987, 0.0
        %2010 = vadd.xlane.f32.xlu0 %v2009
        %v2011 = vpop.xlane.xlu0 %2010
        %v2012 = vrcp.pop %v1990
        %v2013 = vrcp.pop %v1993
        %v2014 = vrcp.pop %v1996
        %v2015 = vrcp.pop %v1999
        %v2016 = vrcp.pop %v2002
        %v2017 = vrcp.pop %v2005
        %v2018 = vrcp.pop %v2008
        %v2019 = vrcp.pop %v2011
        %v2020 = vmul.f32 %v1973, %v2012
        %v2021 = vmul.f32 %v1975, %v2013
        %v2022 = vmul.f32 %v1977, %v2014
        %v2023 = vmul.f32 %v1979, %v2015
        %v2024 = vmul.f32 %v1981, %v2016
        %v2025 = vmul.f32 %v1983, %v2017
        %v2026 = vmul.f32 %v1985, %v2018
        %v2027 = vmul.f32 %v1987, %v2019
        %2028 = vrot.lane.b32.xlu0 %v525, 32
        %v2029 = vpop.permute.xlu0 %2028
        %2030 = vrot.lane.b32.xlu0 %v530, 32
        %v2031 = vpop.permute.xlu0 %2030
        %2032 = vrot.lane.b32.xlu0 %v535, 32
        %v2033 = vpop.permute.xlu0 %2032
        %2034 = vrot.lane.b32.xlu0 %v540, 32
        %v2035 = vpop.permute.xlu0 %2034
        %2036 = vrot.lane.b32.xlu0 %v545, 32
        %v2037 = vpop.permute.xlu0 %2036
        %2038 = vrot.lane.b32.xlu0 %v550, 32
        %v2039 = vpop.permute.xlu0 %2038
        %2040 = vrot.lane.b32.xlu0 %v555, 32
        %v2041 = vpop.permute.xlu0 %2040
        %2042 = vrot.lane.b32.xlu0 %v560, 32
        %v2043 = vpop.permute.xlu0 %2042
        %v2053 = vsel %vm725, %v2020, 0
        %v2056 = vsel %vm725, %v2021, 0
        %v2059 = vsel %vm725, %v2022, 0
        %v2062 = vsel %vm725, %v2023, 0
        %v2065 = vsel %vm725, %v2024, 0
        %v2068 = vsel %vm725, %v2025, 0
        %v2071 = vsel %vm725, %v2026, 0
        %v2074 = vsel %vm725, %v2027, 0
        %2076 = vmatprep.subr.mxu0 0.0
        %2077 = vmatpush1.msra.mxu0 %v2029
        %2078 = vmatprep.subr.mxu0 0.0
        %2079 = vmatpush1.msra.mxu0 %v2031
        %2080 = vmatprep.subr.mxu0 0.0
        %2081 = vmatpush1.msra.mxu0 %v2033
        %2082 = vmatprep.subr.mxu0 0.0
        %2083 = vmatpush1.msra.mxu0 %v2035
        %2084 = vmatprep.subr.mxu0 0.0
        %2085 = vmatpush1.msra.mxu0 %v2037
        %2086 = vmatprep.subr.mxu0 0.0
        %2087 = vmatpush1.msra.mxu0 %v2039
        %2088 = vmatprep.subr.mxu0 0.0
        %2089 = vmatpush1.msra.mxu0 %v2041
        %2090 = vmatprep.subr.mxu0 0.0
        %2091 = vmatpush1.msra.mxu0 %v2043
        %2092 = vmatprep.subr.mxu0 0.0
        %2093 = vmatpush1.msra.mxu0 0.0
        %2094 = vmatprep.subr.mxu0 0.0
        %2095 = vmatpush1.msra.mxu0 0.0
        %2096 = vmatprep.subr.mxu0 0.0
        %2097 = vmatpush1.msra.mxu0 0.0
        %2098 = vmatprep.subr.mxu0 0.0
        %2099 = vmatpush1.msra.mxu0 0.0
        %2100 = vmatprep.subr.mxu0 0.0
        %2101 = vmatpush1.msra.mxu0 0.0
        %2102 = vmatprep.subr.mxu0 0.0
        %2103 = vmatpush1.msra.mxu0 0.0
        %2104 = vmatprep.subr.mxu0 0.0
        %2105 = vmatpush1.msra.mxu0 0.0
        %2106 = vmatprep.subr.mxu0 0.0
        %2107 = vmatpush1.msra.mxu0 0.0
        %2108 = vmatprep.subr.mxu0 0.0
        %2109 = vmatpush1.msra.mxu0 0.0
        %2110 = vmatprep.subr.mxu0 0.0
        %2111 = vmatpush1.msra.mxu0 0.0
        %2112 = vmatprep.subr.mxu0 0.0
        %2113 = vmatpush1.msra.mxu0 0.0
        %2114 = vmatprep.subr.mxu0 0.0
        %2115 = vmatpush1.msra.mxu0 0.0
        %2116 = vmatprep.subr.mxu0 0.0
        %2117 = vmatpush1.msra.mxu0 0.0
        %2118 = vmatprep.subr.mxu0 0.0
        %2119 = vmatpush1.msra.mxu0 0.0
        %2120 = vmatprep.subr.mxu0 0.0
        %2121 = vmatpush1.msra.mxu0 0.0
        %2122 = vmatprep.subr.mxu0 0.0
        %2123 = vmatpush1.msra.mxu0 0.0
        %2124 = vmatprep.subr.mxu0 0.0
        %2125 = vmatpush1.msra.mxu0 0.0
        %2126 = vmatprep.subr.mxu0 0.0
        %2127 = vmatpush1.msra.mxu0 0.0
        %2128 = vmatprep.subr.mxu0 0.0
        %2129 = vmatpush1.msra.mxu0 0.0
        %2130 = vmatprep.subr.mxu0 0.0
        %2131 = vmatpush1.msra.mxu0 0.0
        %2132 = vmatprep.subr.mxu0 0.0
        %2133 = vmatpush1.msra.mxu0 0.0
        %2134 = vmatprep.subr.mxu0 0.0
        %2135 = vmatpush1.msra.mxu0 0.0
        %2136 = vmatprep.subr.mxu0 0.0
        %2137 = vmatpush1.msra.mxu0 0.0
        %2138 = vmatprep.subr.mxu0 0.0
        %2139 = vmatpush1.msra.mxu0 0.0
        %2140 = vmatprep.mubr.f32.mxu0 0.0
        %2141 = vmatmul.mubr.f32.gmra.mrb[0].mxu0 %v2053
        %v2142 = vpop.f32.mrb[0].mxu0
        %v2143 = vadd.f32 0.0, %v2142
        %v2144 = vpop.f32.mrb[0].mxu0
        %2145 = vmatprep.mubr.f32.mxu0 0.0
        %2146 = vmatmul.mubr.f32.gmra.mrb[0].mxu0 %v2056
        %v2147 = vpop.f32.mrb[0].mxu0
        %v2148 = vadd.f32 0.0, %v2147
        %v2149 = vpop.f32.mrb[0].mxu0
        %2150 = vmatprep.mubr.f32.mxu0 0.0
        %2151 = vmatmul.mubr.f32.gmra.mrb[0].mxu0 %v2059
        %v2152 = vpop.f32.mrb[0].mxu0
        %v2153 = vadd.f32 0.0, %v2152
        %v2154 = vpop.f32.mrb[0].mxu0
        %2155 = vmatprep.mubr.f32.mxu0 0.0
        %2156 = vmatmul.mubr.f32.gmra.mrb[0].mxu0 %v2062
        %v2157 = vpop.f32.mrb[0].mxu0
        %v2158 = vadd.f32 0.0, %v2157
        %v2159 = vpop.f32.mrb[0].mxu0
        %2160 = vmatprep.mubr.f32.mxu0 0.0
        %2161 = vmatmul.mubr.f32.gmra.mrb[0].mxu0 %v2065
        %v2162 = vpop.f32.mrb[0].mxu0
        %v2163 = vadd.f32 0.0, %v2162
        %v2164 = vpop.f32.mrb[0].mxu0
        %2165 = vmatprep.mubr.f32.mxu0 0.0
        %2166 = vmatmul.mubr.f32.gmra.mrb[0].mxu0 %v2068
        %v2167 = vpop.f32.mrb[0].mxu0
        %v2168 = vadd.f32 0.0, %v2167
        %v2169 = vpop.f32.mrb[0].mxu0
        %2170 = vmatprep.mubr.f32.mxu0 0.0
        %2171 = vmatmul.mubr.f32.gmra.mrb[0].mxu0 %v2071
        %v2172 = vpop.f32.mrb[0].mxu0
        %v2173 = vadd.f32 0.0, %v2172
        %v2174 = vpop.f32.mrb[0].mxu0
        %2175 = vmatprep.mubr.f32.mxu0 0.0
        %2176 = vmatmul.mubr.f32.gmra.mrb[0].mxu0 %v2074
        %v2177 = vpop.f32.mrb[0].mxu0
        %v2178 = vadd.f32 0.0, %v2177
        %v2179 = vpop.f32.mrb[0].mxu0
        %2180 = vdwg.mxu0
        %2189 = vrot.lane.b32.xlu0 %v1323, 32
        %v2190 = vpop.permute.xlu0 %2189
        %2191 = vrot.lane.b32.xlu0 %v1328, 32
        %v2192 = vpop.permute.xlu0 %2191
        %2193 = vrot.lane.b32.xlu0 %v1333, 32
        %v2194 = vpop.permute.xlu0 %2193
        %2195 = vrot.lane.b32.xlu0 %v1338, 32
        %v2196 = vpop.permute.xlu0 %2195
        %2197 = vrot.lane.b32.xlu0 %v1343, 32
        %v2198 = vpop.permute.xlu0 %2197
        %2199 = vrot.lane.b32.xlu0 %v1348, 32
        %v2200 = vpop.permute.xlu0 %2199
        %2201 = vrot.lane.b32.xlu0 %v1353, 32
        %v2202 = vpop.permute.xlu0 %2201
        %2203 = vrot.lane.b32.xlu0 %v1358, 32
        %v2204 = vpop.permute.xlu0 %2203
        %2221 = vrot.lane.b32.xlu0 %v1733, 64
        %v2222 = vpop.permute.xlu0 %2221
        %2223 = vrot.lane.b32.xlu0 %v1738, 64
        %v2224 = vpop.permute.xlu0 %2223
        %2225 = vrot.lane.b32.xlu0 %v1743, 64
        %v2226 = vpop.permute.xlu0 %2225
        %2227 = vrot.lane.b32.xlu0 %v1748, 64
        %v2228 = vpop.permute.xlu0 %2227
        %2229 = vrot.lane.b32.xlu0 %v1753, 64
        %v2230 = vpop.permute.xlu0 %2229
        %2231 = vrot.lane.b32.xlu0 %v1758, 64
        %v2232 = vpop.permute.xlu0 %2231
        %2233 = vrot.lane.b32.xlu0 %v1763, 64
        %v2234 = vpop.permute.xlu0 %2233
        %2235 = vrot.lane.b32.xlu0 %v1768, 64
        %v2236 = vpop.permute.xlu0 %2235
        %2253 = vrot.lane.b32.xlu0 %v2143, 96
        %v2254 = vpop.permute.xlu0 %2253
        %2255 = vrot.lane.b32.xlu0 %v2148, 96
        %v2256 = vpop.permute.xlu0 %2255
        %2257 = vrot.lane.b32.xlu0 %v2153, 96
        %v2258 = vpop.permute.xlu0 %2257
        %2259 = vrot.lane.b32.xlu0 %v2158, 96
        %v2260 = vpop.permute.xlu0 %2259
        %2261 = vrot.lane.b32.xlu0 %v2163, 96
        %v2262 = vpop.permute.xlu0 %2261
        %2263 = vrot.lane.b32.xlu0 %v2168, 96
        %v2264 = vpop.permute.xlu0 %2263
        %2265 = vrot.lane.b32.xlu0 %v2173, 96
        %v2266 = vpop.permute.xlu0 %2265
        %2267 = vrot.lane.b32.xlu0 %v2178, 96
        %v2268 = vpop.permute.xlu0 %2267
        %v2277 = vsel %vm571, %v905, %v2190
        %v2278 = vsel %vm571, %v910, %v2192
        %v2279 = vsel %vm571, %v915, %v2194
        %v2280 = vsel %vm571, %v920, %v2196
        %v2281 = vsel %vm571, %v925, %v2198
        %v2282 = vsel %vm571, %v930, %v2200
        %v2283 = vsel %vm571, %v935, %v2202
        %v2284 = vsel %vm571, %v940, %v2204
        %v2285 = vsel %vm725, %v2277, %v2222
        %v2286 = vsel %vm725, %v2278, %v2224
        %v2287 = vsel %vm725, %v2279, %v2226
        %v2288 = vsel %vm725, %v2280, %v2228
        %v2289 = vsel %vm725, %v2281, %v2230
        %v2290 = vsel %vm725, %v2282, %v2232
        %v2291 = vsel %vm725, %v2283, %v2234
        %v2292 = vsel %vm725, %v2284, %v2236
        %vm2293 = vcmask 785408
        %v2294 = vsel %vm2293, %v2285, %v2254
        %v2295 = vsel %vm2293, %v2286, %v2256
        %v2296 = vsel %vm2293, %v2287, %v2258
        %v2297 = vsel %vm2293, %v2288, %v2260
        %v2298 = vsel %vm2293, %v2289, %v2262
        %v2299 = vsel %vm2293, %v2290, %v2264
        %v2300 = vsel %vm2293, %v2291, %v2266
        %v2301 = vsel %vm2293, %v2292, %v2268
        %v2302 = vld [vmem:[#allocation7] sm:$0xff]
        %v2303 = vld [vmem:[#allocation7 + $0x8] sm:$0xff]
        %v2304 = vld [vmem:[#allocation7 + $0x10] sm:$0xff]
        %v2305 = vld [vmem:[#allocation7 + $0x18] sm:$0xff]
        %v2306 = vld [vmem:[#allocation7 + $0x20] sm:$0xff]
        %v2307 = vld [vmem:[#allocation7 + $0x28] sm:$0xff]
        %v2308 = vld [vmem:[#allocation7 + $0x30] sm:$0xff]
        %v2309 = vld [vmem:[#allocation7 + $0x38] sm:$0xff]
        %v2310 = vld [vmem:[#allocation7 + $0x40] sm:$0xff]
        %v2311 = vld [vmem:[#allocation7 + $0x48] sm:$0xff]
        %v2312 = vld [vmem:[#allocation7 + $0x50] sm:$0xff]
        %v2313 = vld [vmem:[#allocation7 + $0x58] sm:$0xff]
        %v2314 = vld [vmem:[#allocation7 + $0x60] sm:$0xff]
        %v2315 = vld [vmem:[#allocation7 + $0x68] sm:$0xff]
        %v2316 = vld [vmem:[#allocation7 + $0x70] sm:$0xff]
        %v2317 = vld [vmem:[#allocation7 + $0x78] sm:$0xff]
        %v2318 = vld [vmem:[%s4] sm:$0x1]
        %v2320 = vlaneseq
        %v2321 = vshrl.u32 %v2320, 7
        %v2322 = vsub.s32 0, %v2321
        %v2323 = vrot.slane %v2318, %v2322
        %2325 = vmatprep.subr.mxu0 0.0
        %2326 = vmatpush1.msra.mxu0 %v2302
        %2327 = vmatprep.subr.mxu0 0.0
        %2328 = vmatpush1.msra.mxu0 %v2303
        %2329 = vmatprep.subr.mxu0 0.0
        %2330 = vmatpush1.msra.mxu0 %v2304
        %2331 = vmatprep.subr.mxu0 0.0
        %2332 = vmatpush1.msra.mxu0 %v2305
        %2333 = vmatprep.subr.mxu0 0.0
        %2334 = vmatpush1.msra.mxu0 %v2306
        %2335 = vmatprep.subr.mxu0 0.0
        %2336 = vmatpush1.msra.mxu0 %v2307
        %2337 = vmatprep.subr.mxu0 0.0
        %2338 = vmatpush1.msra.mxu0 %v2308
        %2339 = vmatprep.subr.mxu0 0.0
        %2340 = vmatpush1.msra.mxu0 %v2309
        %2341 = vmatprep.subr.mxu0 0.0
        %2342 = vmatpush1.msra.mxu0 %v2310
        %2343 = vmatprep.subr.mxu0 0.0
        %2344 = vmatpush1.msra.mxu0 %v2311
        %2345 = vmatprep.subr.mxu0 0.0
        %2346 = vmatpush1.msra.mxu0 %v2312
        %2347 = vmatprep.subr.mxu0 0.0
        %2348 = vmatpush1.msra.mxu0 %v2313
        %2349 = vmatprep.subr.mxu0 0.0
        %2350 = vmatpush1.msra.mxu0 %v2314
        %2351 = vmatprep.subr.mxu0 0.0
        %2352 = vmatpush1.msra.mxu0 %v2315
        %2353 = vmatprep.subr.mxu0 0.0
        %2354 = vmatpush1.msra.mxu0 %v2316
        %2355 = vmatprep.subr.mxu0 0.0
        %2356 = vmatpush1.msra.mxu0 %v2317
        %2357 = vmatprep.subr.mxu0 0.0
        %2358 = vmatpush1.msra.mxu0 0.0
        %2359 = vmatprep.subr.mxu0 0.0
        %2360 = vmatpush1.msra.mxu0 0.0
        %2361 = vmatprep.subr.mxu0 0.0
        %2362 = vmatpush1.msra.mxu0 0.0
        %2363 = vmatprep.subr.mxu0 0.0
        %2364 = vmatpush1.msra.mxu0 0.0
        %2365 = vmatprep.subr.mxu0 0.0
        %2366 = vmatpush1.msra.mxu0 0.0
        %2367 = vmatprep.subr.mxu0 0.0
        %2368 = vmatpush1.msra.mxu0 0.0
        %2369 = vmatprep.subr.mxu0 0.0
        %2370 = vmatpush1.msra.mxu0 0.0
        %2371 = vmatprep.subr.mxu0 0.0
        %2372 = vmatpush1.msra.mxu0 0.0
        %2373 = vmatprep.subr.mxu0 0.0
        %2374 = vmatpush1.msra.mxu0 0.0
        %2375 = vmatprep.subr.mxu0 0.0
        %2376 = vmatpush1.msra.mxu0 0.0
        %2377 = vmatprep.subr.mxu0 0.0
        %2378 = vmatpush1.msra.mxu0 0.0
        %2379 = vmatprep.subr.mxu0 0.0
        %2380 = vmatpush1.msra.mxu0 0.0
        %2381 = vmatprep.subr.mxu0 0.0
        %2382 = vmatpush1.msra.mxu0 0.0
        %2383 = vmatprep.subr.mxu0 0.0
        %2384 = vmatpush1.msra.mxu0 0.0
        %2385 = vmatprep.subr.mxu0 0.0
        %2386 = vmatpush1.msra.mxu0 0.0
        %2387 = vmatprep.subr.mxu0 0.0
        %2388 = vmatpush1.msra.mxu0 0.0
        %2389 = vmatprep.mubr.f32.mxu0 0.0
        %2390 = vmatmul.mubr.f32.gmra.mrb[0].mxu0 %v2294
        %v2391 = vpop.f32.mrb[0].mxu0
        %v2392 = vadd.f32 %v2323, %v2391
        %v2393 = vpop.f32.mrb[0].mxu0
        %2394 = vmatprep.mubr.f32.mxu0 0.0
        %2395 = vmatmul.mubr.f32.gmra.mrb[0].mxu0 %v2295
        %v2396 = vpop.f32.mrb[0].mxu0
        %v2397 = vadd.f32 %v2323, %v2396
        %v2398 = vpop.f32.mrb[0].mxu0
        %2399 = vmatprep.mubr.f32.mxu0 0.0
        %2400 = vmatmul.mubr.f32.gmra.mrb[0].mxu0 %v2296
        %v2401 = vpop.f32.mrb[0].mxu0
        %v2402 = vadd.f32 %v2323, %v2401
        %v2403 = vpop.f32.mrb[0].mxu0
        %2404 = vmatprep.mubr.f32.mxu0 0.0
        %2405 = vmatmul.mubr.f32.gmra.mrb[0].mxu0 %v2297
        %v2406 = vpop.f32.mrb[0].mxu0
        %v2407 = vadd.f32 %v2323, %v2406
        %v2408 = vpop.f32.mrb[0].mxu0
        %2409 = vmatprep.mubr.f32.mxu0 0.0
        %2410 = vmatmul.mubr.f32.gmra.mrb[0].mxu0 %v2298
        %v2411 = vpop.f32.mrb[0].mxu0
        %v2412 = vadd.f32 %v2323, %v2411
        %v2413 = vpop.f32.mrb[0].mxu0
        %2414 = vmatprep.mubr.f32.mxu0 0.0
        %2415 = vmatmul.mubr.f32.gmra.mrb[0].mxu0 %v2299
        %v2416 = vpop.f32.mrb[0].mxu0
        %v2417 = vadd.f32 %v2323, %v2416
        %v2418 = vpop.f32.mrb[0].mxu0
        %2419 = vmatprep.mubr.f32.mxu0 0.0
        %2420 = vmatmul.mubr.f32.gmra.mrb[0].mxu0 %v2300
        %v2421 = vpop.f32.mrb[0].mxu0
        %v2422 = vadd.f32 %v2323, %v2421
        %v2423 = vpop.f32.mrb[0].mxu0
        %2424 = vmatprep.mubr.f32.mxu0 0.0
        %2425 = vmatmul.mubr.f32.gmra.mrb[0].mxu0 %v2301
        %v2426 = vpop.f32.mrb[0].mxu0
        %v2427 = vadd.f32 %v2323, %v2426
        %v2428 = vpop.f32.mrb[0].mxu0
        %2429 = vdwg.mxu0
        %2430 = vst [vmem:[%s271] sm:$0xff] %v2392
        %2431 = vst [vmem:[%s271 + $0x8] sm:$0xff] %v2397
        %2432 = vst [vmem:[%s271 + $0x10] sm:$0xff] %v2402
        %2433 = vst [vmem:[%s271 + $0x18] sm:$0xff] %v2407
        %2434 = vst [vmem:[%s271 + $0x20] sm:$0xff] %v2412
        %2435 = vst [vmem:[%s271 + $0x28] sm:$0xff] %v2417
        %2436 = vst [vmem:[%s271 + $0x30] sm:$0xff] %v2422
        %2437 = vst [vmem:[%s271 + $0x38] sm:$0xff] %v2427
        %s2438 = sand.u32 %s141, 1
        %s2439 = scalar_lea.sflag [#allocation4], %s2438
        %s2440 = sand.u32 %s141, 1
        %s2441 = smul.addr %s2440, 64
        %s2442 = scalar_lea.vmem [#allocation8], %s2441
        // Predicated region
        $region53: #{attention.1} parent=39 // pred_check
          %p2443 = pneg %p151
        $region54: #{attention.1} parent=39 // pred_check_branch
          %2445 = sbr.rel (%p2443) target = $region56
        $region55: #{attention.1} parent=39 // pred_region
          %s2447 = ssub.s32 1024, 1024
          %2448 = vsyncadd %s2439, %s2447
          %s2449 = smul.addr %s23, 8
          %s2450 = smul.addr %s2449, 128
          %s2451 = scalar_lea.hbm %s5, %s2450
          %s2452 = sshll.u32 %s2442, 4
          %s2453 = int_to_ptr.vmem [resolvable:$true] %s2452
          %2458 = dma.vmem_to_hbm [thread:$0]  %s2453, 1024, %s2451, %s2439, 128, 128, 8
        $region56: #{attention.1} parent=39 // pred_fallthru
          _
      $region40: #{attention.1} parent=5 // pred_fallthru
        _
      %p2459 = scmp.le.s32.totalorder 2, %s18
      // Predicated region
      $region57: #{attention.1} parent=5 // pred_check
        %p2460 = pneg %p2459
      $region58: #{attention.1} parent=5 // pred_check_branch
        %2462 = sbr.rel (%p2460) target = $region60
      $region59: #{attention.1} parent=5 // pred_region
        %s2463 = ssub.s32 %s18, 2
        // Predicated region
        $region61: #{attention.1} parent=59 // pred_check
          %p2464 = pneg %p157
        $region62: #{attention.1} parent=59 // pred_check_branch
          %2466 = sbr.rel (%p2464) target = $region64
        $region63: #{attention.1} parent=59 // pred_region
          %s2467 = sand.u32 %s142, 1
          %s2468 = scalar_lea.sflag [#allocation4], %s2467
          %s2469 = sand.u32 %s142, 1
          %s2470 = smul.addr %s2469, 64
          %s2471 = scalar_lea.vmem [#allocation8], %s2470
          %2472 = dma.done %s2468, 1024
        $region64: #{attention.1} parent=59 // pred_fallthru
          _
      $region60: #{attention.1} parent=5 // pred_fallthru
        _
    $region6: #{attention.1} parent=1 // loop_footer
      %s22 = sadd.s32 1, %s18
    $region7: #{attention.1} parent=1 // loop_footer_branch
      %17 = sbr.rel target = $region3
    $region8: #{attention.1} parent=1 // loop_exit
      _
    %2473 = vsyncpa [#allocation3], 1
    %s2474 = scalar_lea.sflag [#allocation3], 1
    %2475 = vsyncpa %s2474, 1
    %2476 = vsyncpa [#allocation6], 1
    %2477 = vsyncpa [#allocation4], 1
    %s2478 = scalar_lea.sflag [#allocation4], 1
    %2479 = vsyncpa %s2478, 1

</llo_original>
